<compile_context>
chip_gen: v7x
topology: tpu7x:2x2x1
jax: 0.10.0
libtpu: 0.0.40
codegen_flags: <defaults>
</compile_context>

<pallas_src>
import numpy as np
import jax
import jax.numpy as jnp
from jax import lax
from jax.experimental import pallas as pl
from jax.experimental.pallas import tpu as pltpu

D_MODEL = 32
NHEAD = 4
HEAD_DIM = D_MODEL // NHEAD
DFF = 64
EPS = 1e-5          # nn.LayerNorm default
NEG_INF = -1e30


# ---------------------------- in-kernel helpers ------------------------------

def _layernorm(x, w, b):
    """x: (N, D); w, b: (1, D). Biased variance, matching nn.LayerNorm."""
    mu = jnp.mean(x, axis=-1, keepdims=True)
    xc = x - mu
    var = jnp.mean(xc * xc, axis=-1, keepdims=True)
    return xc * lax.rsqrt(var + EPS) * w + b


# ------------------------------ Pallas kernel --------------------------------

def encoder_layer_kernel(
        src_ref, pos_ref, bias_ref,
        wq_ref, wk_ref, wv_ref, bq_ref, bk_ref, bv_ref,
        wo_ref, bo_ref,
        w1_ref, b1_ref, w2_ref, b2_ref,
        n1w_ref, n1b_ref, n2w_ref, n2b_ref,
        out_ref):
    """One full TransformerEncoderLayer forward on (N, D) rows, N = T*B.

    bias_ref is an (N, N) additive attention bias: 0.0 where query/key rows
    belong to the same batch element, NEG_INF otherwise (keeps the flattened
    batch from attending across batch elements).
    """
    x = src_ref[...]                     # (N, D) f32
    pos = pos_ref[...]                   # (N, D)
    bias = bias_ref[...]                 # (N, N)

    # ---------------- self-attention block (pre-norm) ----------------
    x2 = _layernorm(x, n1w_ref[...], n1b_ref[...])   # norm1(src)
    qk_in = x2 + pos                                  # q = k = src2 + pos
    scale = float(HEAD_DIM) ** -0.5

    acc = None
    for h in range(NHEAD):               # static unroll; NHEAD is small
        q = jnp.dot(qk_in, wq_ref[h],
                    preferred_element_type=jnp.float32) + bq_ref[h]   # (N, hd)
        k = jnp.dot(qk_in, wk_ref[h],
                    preferred_element_type=jnp.float32) + bk_ref[h]   # (N, hd)
        v = jnp.dot(x2, wv_ref[h],
                    preferred_element_type=jnp.float32) + bv_ref[h]   # (N, hd)

        # scores: contract the head dim of q and k directly (no transposes).
        s = lax.dot_general(q * scale, k, (((1,), (1,)), ((), ())),
                            preferred_element_type=jnp.float32) + bias  # (N,N)
        s = s - jnp.max(s, axis=-1, keepdims=True)
        p = jnp.exp(s)
        o_h = jnp.dot(p, v, preferred_element_type=jnp.float32)          # (N,hd)
        # normalize after PV: N*hd divides instead of N*N, via EUP reciprocal
        o_h = o_h * pl.reciprocal(jnp.sum(p, axis=-1, keepdims=True),
                                  approx=True)

        # per-head slice of the output projection (host-split) -> accumulate,
        # which replaces the concat-over-heads + full out-proj matmul.
        contrib = jnp.dot(o_h, wo_ref[h],
                          preferred_element_type=jnp.float32)             # (N,D)
        acc = contrib if acc is None else acc + contrib

    x = x + acc + bo_ref[...]            # src = src + dropout1(attn)  (eval)

    # ---------------------- feed-forward block -----------------------
    x2 = _layernorm(x, n2w_ref[...], n2b_ref[...])   # norm2(src)
    h1 = jnp.maximum(
        jnp.dot(x2, w1_ref[...], preferred_element_type=jnp.float32)
        + b1_ref[...], 0.0)                                               # relu
    ffn = jnp.dot(h1, w2_ref[...],
                  preferred_element_type=jnp.float32) + b2_ref[...]
    out_ref[...] = (x + ffn).astype(out_ref.dtype)   # src = src + dropout2(ffn)


# --------------------------------- wrapper -----------------------------------

def _batch_mask_bias(T, B):
    """Additive (T*B, T*B) bias: 0 for same-batch pairs, NEG_INF otherwise.

    Rows are the row-major flattening of (T, B), so row n belongs to batch
    n % B. Built with numpy (trace-time constant, no device dispatch).
    """
    n = T * B
    b_idx = np.arange(n, dtype=np.int32) % B
    same = b_idx[:, None] == b_idx[None, :]
    return np.where(same, 0.0, NEG_INF).astype(np.float32)


def transformer_encoder_layer(src, pos, kp):
    """src, pos: (T, B, D) float32 (PyTorch nn.MultiheadAttention layout).

    Returns (T, B, D). Matches TransformerEncoderLayer with
    normalize_before=True, eval mode, no masks.
    """
    T, B, D = src.shape
    n = T * B
    src2d = src.reshape(n, D)      # free: row-major merge of leading dims
    pos2d = pos.reshape(n, D)
    bias = _batch_mask_bias(T, B)

    inputs = (src2d, pos2d, bias,
              kp["wq"], kp["wk"], kp["wv"], kp["bq"], kp["bk"], kp["bv"],
              kp["wo"], kp["bo"],
              kp["w1"], kp["b1"], kp["w2"], kp["b2"],
              kp["n1w"], kp["n1b"], kp["n2w"], kp["n2b"])

    vmem = pl.BlockSpec(memory_space=pltpu.MemorySpace.VMEM)
    out = pl.pallas_call(
        encoder_layer_kernel,
        out_shape=jax.ShapeDtypeStruct((n, D), jnp.float32),
        in_specs=[vmem] * len(inputs),
        out_specs=vmem,
    )(*inputs)
    return out.reshape(T, B, D)


# ------------------- host-side parameter prep (PyTorch -> kernel) ------------

def prepare_kernel_params(p, d_model=D_MODEL, nhead=NHEAD):
    """Pre-transpose / pre-split all weights so the kernel never does `.T`,
    lane-slicing of the fused in_proj, or a head concatenate."""
    D = d_model
    hd = D // nhead
    in_w, in_b = p["in_proj_w"], p["in_proj_b"]       # (3D, D), (3D,)

    def split_w(w):   # torch (D_out, D_in) block -> (H, D_in, hd)
        return jnp.transpose(w.reshape(nhead, hd, D), (0, 2, 1))

    def split_b(b):   # (D,) -> (H, 1, hd)
        return b.reshape(nhead, 1, hd)

    return {
        "wq": split_w(in_w[0:D]),          "bq": split_b(in_b[0:D]),
        "wk": split_w(in_w[D:2 * D]),      "bk": split_b(in_b[D:2 * D]),
        "wv": split_w(in_w[2 * D:3 * D]),  "bv": split_b(in_b[2 * D:3 * D]),
        # out_proj: out = concat_h(o_h) @ Wo.T  ==  sum_h o_h @ Wo.T[h*hd:(h+1)*hd]
        "wo": jnp.transpose(p["out_w"]).reshape(nhead, hd, D),   # (H, hd, D)
        "bo": p["out_b"].reshape(1, D),
        "w1": jnp.transpose(p["l1_w"]),    # (D, DFF)
        "b1": p["l1_b"].reshape(1, -1),
        "w2": jnp.transpose(p["l2_w"]),    # (DFF, D)
        "b2": p["l2_b"].reshape(1, -1),
        "n1w": p["n1_w"].reshape(1, D), "n1b": p["n1_b"].reshape(1, D),
        "n2w": p["n2_w"].reshape(1, D), "n2b": p["n2_b"].reshape(1, D),
    }


def init_torch_params(key, d_model=D_MODEL, dff=DFF):
    """Parameters in the native PyTorch layouts."""
    ks = jax.random.split(key, 8)
    s = 0.05

    def rnd(k, shape):
        return (s * jax.random.normal(k, shape)).astype(jnp.float32)

    return {
        "in_proj_w": rnd(ks[0], (3 * d_model, d_model)),
        "in_proj_b": rnd(ks[1], (3 * d_model,)),
        "out_w": rnd(ks[2], (d_model, d_model)),
        "out_b": rnd(ks[3], (d_model,)),
        "l1_w": rnd(ks[4], (dff, d_model)),
        "l1_b": rnd(ks[5], (dff,)),
        "l2_w": rnd(ks[6], (d_model, dff)),
        "l2_b": rnd(ks[7], (d_model,)),
        "n1_w": jnp.ones((d_model,), jnp.float32),
        "n1_b": jnp.zeros((d_model,), jnp.float32),
        "n2_w": jnp.ones((d_model,), jnp.float32),
        "n2_b": jnp.zeros((d_model,), jnp.float32),
    }


# ----------------- pure-JAX reference mirroring the PyTorch module -----------

def reference_encoder_layer(src, pos, p):
    T, B, D = src.shape
    H, hd = NHEAD, D // NHEAD

    def ln(x, w, b):
        mu = jnp.mean(x, -1, keepdims=True)
        var = jnp.mean((x - mu) ** 2, -1, keepdims=True)
        return (x - mu) / jnp.sqrt(var + EPS) * w + b

    src2 = ln(src, p["n1_w"], p["n1_b"])
    q = k = src2 + pos
    in_w, in_b = p["in_proj_w"], p["in_proj_b"]
    qp = q @ in_w[0:D].T + in_b[0:D]
    kp = k @ in_w[D:2 * D].T + in_b[D:2 * D]
    vp = src2 @ in_w[2 * D:].T + in_b[2 * D:]

    def split(x):   # (T, B, D) -> (B*H, T, hd), matching F.multi_head_attention
        return x.reshape(T, B * H, hd).transpose(1, 0, 2)

    qh, kh, vh = split(qp), split(kp), split(vp)
    scores = jnp.einsum("btd,bsd->bts", qh * (hd ** -0.5), kh)
    attn = jax.nn.softmax(scores, axis=-1)
    o = jnp.einsum("bts,bsd->btd", attn, vh)
    o = o.transpose(1, 0, 2).reshape(T, B, D)
    o = o @ p["out_w"].T + p["out_b"]
    src = src + o

    src2 = ln(src, p["n2_w"], p["n2_b"])
    ffn = jnp.maximum(src2 @ p["l1_w"].T + p["l1_b"], 0.0) @ p["l2_w"].T + p["l2_b"]
    return src + ffn


# ----------------------------------- main -------------------------------------

if __name__ == "__main__":
    T, B = 8, 2
    key = jax.random.PRNGKey(0)
    k_src, k_pos, k_par = jax.random.split(key, 3)

    src = jax.random.normal(k_src, (T, B, D_MODEL), jnp.float32)
    pos = jax.random.normal(k_pos, (T, B, D_MODEL), jnp.float32)
    params = init_torch_params(k_par)
    kparams = prepare_kernel_params(params)

    fwd = jax.jit(transformer_encoder_layer)
    out = jax.block_until_ready(fwd(src, pos, kparams))

    ref = reference_encoder_layer(src, pos, params)

    assert out.shape == (T, B, D_MODEL)
    # pl.reciprocal(approx=True) in the softmax denominator -> slightly looser
    # tolerance than pure f32.
    assert jnp.allclose(out, ref, atol=1e-2, rtol=1e-2), (
        "mismatch vs reference: max abs diff = "
        f"{float(jnp.max(jnp.abs(out - ref)))}")
    print("KERNEL_OK")
</pallas_src>

<mosaic_0001>
module attributes {stable_mosaic.version = 11 : i64} {
  func.func @encoder_layer_kernel(%arg0: memref<16x32xf32, #tpu.memory_space<vmem>>, %arg1: memref<16x32xf32, #tpu.memory_space<vmem>>, %arg2: memref<16x16xf32, #tpu.memory_space<vmem>>, %arg3: memref<4x32x8xf32, #tpu.memory_space<vmem>>, %arg4: memref<4x32x8xf32, #tpu.memory_space<vmem>>, %arg5: memref<4x32x8xf32, #tpu.memory_space<vmem>>, %arg6: memref<4x1x8xf32, #tpu.memory_space<vmem>>, %arg7: memref<4x1x8xf32, #tpu.memory_space<vmem>>, %arg8: memref<4x1x8xf32, #tpu.memory_space<vmem>>, %arg9: memref<4x8x32xf32, #tpu.memory_space<vmem>>, %arg10: memref<1x32xf32, #tpu.memory_space<vmem>>, %arg11: memref<32x64xf32, #tpu.memory_space<vmem>>, %arg12: memref<1x64xf32, #tpu.memory_space<vmem>>, %arg13: memref<64x32xf32, #tpu.memory_space<vmem>>, %arg14: memref<1x32xf32, #tpu.memory_space<vmem>>, %arg15: memref<1x32xf32, #tpu.memory_space<vmem>>, %arg16: memref<1x32xf32, #tpu.memory_space<vmem>>, %arg17: memref<1x32xf32, #tpu.memory_space<vmem>>, %arg18: memref<1x32xf32, #tpu.memory_space<vmem>>, %arg19: memref<16x32xf32, #tpu.memory_space<vmem>>) attributes {dimension_semantics = [], scalar_prefetch = 0 : i64, scratch_operands = 0 : i64, tpu.core_type = #tpu.core_type<tc>} {
    %c0 = arith.constant 0 : index
    %c0_0 = arith.constant 0 : index
    %0 = vector.load %arg0[%c0, %c0_0] : memref<16x32xf32, #tpu.memory_space<vmem>>, vector<16x32xf32>
    %c0_1 = arith.constant 0 : index
    %c0_2 = arith.constant 0 : index
    %1 = vector.load %arg1[%c0_1, %c0_2] : memref<16x32xf32, #tpu.memory_space<vmem>>, vector<16x32xf32>
    %c0_3 = arith.constant 0 : index
    %c0_4 = arith.constant 0 : index
    %2 = vector.load %arg2[%c0_3, %c0_4] : memref<16x16xf32, #tpu.memory_space<vmem>>, vector<16x16xf32>
    %c0_5 = arith.constant 0 : index
    %c0_6 = arith.constant 0 : index
    %3 = vector.load %arg15[%c0_5, %c0_6] : memref<1x32xf32, #tpu.memory_space<vmem>>, vector<1x32xf32>
    %c0_7 = arith.constant 0 : index
    %c0_8 = arith.constant 0 : index
    %4 = vector.load %arg16[%c0_7, %c0_8] : memref<1x32xf32, #tpu.memory_space<vmem>>, vector<1x32xf32>
    %cst = arith.constant dense<0.000000e+00> : vector<16xf32>
    %5 = vector.multi_reduction <add>, %0, %cst [1] : vector<16x32xf32> to vector<16xf32>
    %6 = vector.shape_cast %5 : vector<16xf32> to vector<16x1xf32>
    %cst_9 = arith.constant 3.200000e+01 : f32
    %7 = vector.broadcast %cst_9 : f32 to vector<16x1xf32>
    %8 = arith.divf %6, %7 : vector<16x1xf32>
    %9 = vector.broadcast %8 : vector<16x1xf32> to vector<16x32xf32>
    %10 = arith.subf %0, %9 : vector<16x32xf32>
    %11 = arith.mulf %10, %10 : vector<16x32xf32>
    %cst_10 = arith.constant dense<0.000000e+00> : vector<16xf32>
    %12 = vector.multi_reduction <add>, %11, %cst_10 [1] : vector<16x32xf32> to vector<16xf32>
    %13 = vector.shape_cast %12 : vector<16xf32> to vector<16x1xf32>
    %cst_11 = arith.constant 3.200000e+01 : f32
    %14 = vector.broadcast %cst_11 : f32 to vector<16x1xf32>
    %15 = arith.divf %13, %14 : vector<16x1xf32>
    %cst_12 = arith.constant 9.99999974E-6 : f32
    %16 = vector.broadcast %cst_12 : f32 to vector<16x1xf32>
    %17 = arith.addf %15, %16 : vector<16x1xf32>
    %18 = math.rsqrt %17 : vector<16x1xf32>
    %19 = vector.broadcast %18 : vector<16x1xf32> to vector<16x32xf32>
    %20 = arith.mulf %10, %19 : vector<16x32xf32>
    %21 = vector.broadcast %3 : vector<1x32xf32> to vector<16x32xf32>
    %22 = arith.mulf %20, %21 : vector<16x32xf32>
    %23 = vector.broadcast %4 : vector<1x32xf32> to vector<16x32xf32>
    %24 = arith.addf %22, %23 : vector<16x32xf32>
    %25 = arith.addf %24, %1 : vector<16x32xf32>
    %c0_13 = arith.constant 0 : index
    %c0_14 = arith.constant 0 : index
    %c0_15 = arith.constant 0 : index
    %26 = vector.load %arg3[%c0_13, %c0_14, %c0_15] : memref<4x32x8xf32, #tpu.memory_space<vmem>>, vector<1x32x8xf32>
    %27 = vector.shape_cast %26 : vector<1x32x8xf32> to vector<32x8xf32>
    %cst_16 = arith.constant dense<0.000000e+00> : vector<16x8xf32>
    %28 = tpu.matmul %25, %27, %cst_16 {dimension_numbers = #tpu.dot_dimension_numbers<[1], [0], [0], [1], [0, 0, 1, 1], [], []>} : vector<16x32xf32>, vector<32x8xf32>, vector<16x8xf32> -> vector<16x8xf32>
    %c0_17 = arith.constant 0 : index
    %c0_18 = arith.constant 0 : index
    %c0_19 = arith.constant 0 : index
    %29 = vector.load %arg6[%c0_17, %c0_18, %c0_19] : memref<4x1x8xf32, #tpu.memory_space<vmem>>, vector<1x1x8xf32>
    %30 = vector.shape_cast %29 : vector<1x1x8xf32> to vector<1x8xf32>
    %31 = vector.broadcast %30 : vector<1x8xf32> to vector<16x8xf32>
    %32 = arith.addf %28, %31 : vector<16x8xf32>
    %c0_20 = arith.constant 0 : index
    %c0_21 = arith.constant 0 : index
    %c0_22 = arith.constant 0 : index
    %33 = vector.load %arg4[%c0_20, %c0_21, %c0_22] : memref<4x32x8xf32, #tpu.memory_space<vmem>>, vector<1x32x8xf32>
    %34 = vector.shape_cast %33 : vector<1x32x8xf32> to vector<32x8xf32>
    %cst_23 = arith.constant dense<0.000000e+00> : vector<16x8xf32>
    %35 = tpu.matmul %25, %34, %cst_23 {dimension_numbers = #tpu.dot_dimension_numbers<[1], [0], [0], [1], [0, 0, 1, 1], [], []>} : vector<16x32xf32>, vector<32x8xf32>, vector<16x8xf32> -> vector<16x8xf32>
    %c0_24 = arith.constant 0 : index
    %c0_25 = arith.constant 0 : index
    %c0_26 = arith.constant 0 : index
    %36 = vector.load %arg7[%c0_24, %c0_25, %c0_26] : memref<4x1x8xf32, #tpu.memory_space<vmem>>, vector<1x1x8xf32>
    %37 = vector.shape_cast %36 : vector<1x1x8xf32> to vector<1x8xf32>
    %38 = vector.broadcast %37 : vector<1x8xf32> to vector<16x8xf32>
    %39 = arith.addf %35, %38 : vector<16x8xf32>
    %c0_27 = arith.constant 0 : index
    %c0_28 = arith.constant 0 : index
    %c0_29 = arith.constant 0 : index
    %40 = vector.load %arg5[%c0_27, %c0_28, %c0_29] : memref<4x32x8xf32, #tpu.memory_space<vmem>>, vector<1x32x8xf32>
    %41 = vector.shape_cast %40 : vector<1x32x8xf32> to vector<32x8xf32>
    %cst_30 = arith.constant dense<0.000000e+00> : vector<16x8xf32>
    %42 = tpu.matmul %24, %41, %cst_30 {dimension_numbers = #tpu.dot_dimension_numbers<[1], [0], [0], [1], [0, 0, 1, 1], [], []>} : vector<16x32xf32>, vector<32x8xf32>, vector<16x8xf32> -> vector<16x8xf32>
    %c0_31 = arith.constant 0 : index
    %c0_32 = arith.constant 0 : index
    %c0_33 = arith.constant 0 : index
    %43 = vector.load %arg8[%c0_31, %c0_32, %c0_33] : memref<4x1x8xf32, #tpu.memory_space<vmem>>, vector<1x1x8xf32>
    %44 = vector.shape_cast %43 : vector<1x1x8xf32> to vector<1x8xf32>
    %45 = vector.broadcast %44 : vector<1x8xf32> to vector<16x8xf32>
    %46 = arith.addf %42, %45 : vector<16x8xf32>
    %cst_34 = arith.constant 0.353553385 : f32
    %47 = vector.broadcast %cst_34 : f32 to vector<16x8xf32>
    %48 = arith.mulf %32, %47 : vector<16x8xf32>
    %cst_35 = arith.constant dense<0.000000e+00> : vector<16x16xf32>
    %49 = tpu.matmul %48, %39, %cst_35 {dimension_numbers = #tpu.dot_dimension_numbers<[1], [1], [0], [0], [0, 0, 1, 0], [], []>} : vector<16x8xf32>, vector<16x8xf32>, vector<16x16xf32> -> vector<16x16xf32>
    %50 = arith.addf %49, %2 : vector<16x16xf32>
    %cst_36 = arith.constant dense<0xFF800000> : vector<16xf32>
    %51 = vector.multi_reduction <maximumf>, %50, %cst_36 [1] : vector<16x16xf32> to vector<16xf32>
    %52 = vector.shape_cast %51 : vector<16xf32> to vector<16x1xf32>
    %53 = vector.broadcast %52 : vector<16x1xf32> to vector<16x16xf32>
    %54 = arith.subf %50, %53 : vector<16x16xf32>
    %55 = math.exp %54 : vector<16x16xf32>
    %cst_37 = arith.constant dense<0.000000e+00> : vector<16x8xf32>
    %56 = tpu.matmul %55, %46, %cst_37 {dimension_numbers = #tpu.dot_dimension_numbers<[1], [0], [0], [1], [0, 0, 1, 1], [], []>} : vector<16x16xf32>, vector<16x8xf32>, vector<16x8xf32> -> vector<16x8xf32>
    %cst_38 = arith.constant dense<0.000000e+00> : vector<16xf32>
    %57 = vector.multi_reduction <add>, %55, %cst_38 [1] : vector<16x16xf32> to vector<16xf32>
    %58 = vector.shape_cast %57 : vector<16xf32> to vector<16x1xf32>
    %59 = tpu.reciprocal %58 {approx = true} : vector<16x1xf32> -> vector<16x1xf32>
    %60 = vector.broadcast %59 : vector<16x1xf32> to vector<16x8xf32>
    %61 = arith.mulf %56, %60 : vector<16x8xf32>
    %c0_39 = arith.constant 0 : index
    %c0_40 = arith.constant 0 : index
    %c0_41 = arith.constant 0 : index
    %62 = vector.load %arg9[%c0_39, %c0_40, %c0_41] : memref<4x8x32xf32, #tpu.memory_space<vmem>>, vector<1x8x32xf32>
    %63 = vector.shape_cast %62 : vector<1x8x32xf32> to vector<8x32xf32>
    %cst_42 = arith.constant dense<0.000000e+00> : vector<16x32xf32>
    %64 = tpu.matmul %61, %63, %cst_42 {dimension_numbers = #tpu.dot_dimension_numbers<[1], [0], [0], [1], [0, 0, 1, 1], [], []>} : vector<16x8xf32>, vector<8x32xf32>, vector<16x32xf32> -> vector<16x32xf32>
    %c1 = arith.constant 1 : index
    %c0_43 = arith.constant 0 : index
    %c0_44 = arith.constant 0 : index
    %65 = vector.load %arg3[%c1, %c0_43, %c0_44] : memref<4x32x8xf32, #tpu.memory_space<vmem>>, vector<1x32x8xf32>
    %66 = vector.shape_cast %65 : vector<1x32x8xf32> to vector<32x8xf32>
    %cst_45 = arith.constant dense<0.000000e+00> : vector<16x8xf32>
    %67 = tpu.matmul %25, %66, %cst_45 {dimension_numbers = #tpu.dot_dimension_numbers<[1], [0], [0], [1], [0, 0, 1, 1], [], []>} : vector<16x32xf32>, vector<32x8xf32>, vector<16x8xf32> -> vector<16x8xf32>
    %c1_46 = arith.constant 1 : index
    %c0_47 = arith.constant 0 : index
    %c0_48 = arith.constant 0 : index
    %68 = vector.load %arg6[%c1_46, %c0_47, %c0_48] : memref<4x1x8xf32, #tpu.memory_space<vmem>>, vector<1x1x8xf32>
    %69 = vector.shape_cast %68 : vector<1x1x8xf32> to vector<1x8xf32>
    %70 = vector.broadcast %69 : vector<1x8xf32> to vector<16x8xf32>
    %71 = arith.addf %67, %70 : vector<16x8xf32>
    %c1_49 = arith.constant 1 : index
    %c0_50 = arith.constant 0 : index
    %c0_51 = arith.constant 0 : index
    %72 = vector.load %arg4[%c1_49, %c0_50, %c0_51] : memref<4x32x8xf32, #tpu.memory_space<vmem>>, vector<1x32x8xf32>
    %73 = vector.shape_cast %72 : vector<1x32x8xf32> to vector<32x8xf32>
    %cst_52 = arith.constant dense<0.000000e+00> : vector<16x8xf32>
    %74 = tpu.matmul %25, %73, %cst_52 {dimension_numbers = #tpu.dot_dimension_numbers<[1], [0], [0], [1], [0, 0, 1, 1], [], []>} : vector<16x32xf32>, vector<32x8xf32>, vector<16x8xf32> -> vector<16x8xf32>
    %c1_53 = arith.constant 1 : index
    %c0_54 = arith.constant 0 : index
    %c0_55 = arith.constant 0 : index
    %75 = vector.load %arg7[%c1_53, %c0_54, %c0_55] : memref<4x1x8xf32, #tpu.memory_space<vmem>>, vector<1x1x8xf32>
    %76 = vector.shape_cast %75 : vector<1x1x8xf32> to vector<1x8xf32>
    %77 = vector.broadcast %76 : vector<1x8xf32> to vector<16x8xf32>
    %78 = arith.addf %74, %77 : vector<16x8xf32>
    %c1_56 = arith.constant 1 : index
    %c0_57 = arith.constant 0 : index
    %c0_58 = arith.constant 0 : index
    %79 = vector.load %arg5[%c1_56, %c0_57, %c0_58] : memref<4x32x8xf32, #tpu.memory_space<vmem>>, vector<1x32x8xf32>
    %80 = vector.shape_cast %79 : vector<1x32x8xf32> to vector<32x8xf32>
    %cst_59 = arith.constant dense<0.000000e+00> : vector<16x8xf32>
    %81 = tpu.matmul %24, %80, %cst_59 {dimension_numbers = #tpu.dot_dimension_numbers<[1], [0], [0], [1], [0, 0, 1, 1], [], []>} : vector<16x32xf32>, vector<32x8xf32>, vector<16x8xf32> -> vector<16x8xf32>
    %c1_60 = arith.constant 1 : index
    %c0_61 = arith.constant 0 : index
    %c0_62 = arith.constant 0 : index
    %82 = vector.load %arg8[%c1_60, %c0_61, %c0_62] : memref<4x1x8xf32, #tpu.memory_space<vmem>>, vector<1x1x8xf32>
    %83 = vector.shape_cast %82 : vector<1x1x8xf32> to vector<1x8xf32>
    %84 = vector.broadcast %83 : vector<1x8xf32> to vector<16x8xf32>
    %85 = arith.addf %81, %84 : vector<16x8xf32>
    %cst_63 = arith.constant 0.353553385 : f32
    %86 = vector.broadcast %cst_63 : f32 to vector<16x8xf32>
    %87 = arith.mulf %71, %86 : vector<16x8xf32>
    %cst_64 = arith.constant dense<0.000000e+00> : vector<16x16xf32>
    %88 = tpu.matmul %87, %78, %cst_64 {dimension_numbers = #tpu.dot_dimension_numbers<[1], [1], [0], [0], [0, 0, 1, 0], [], []>} : vector<16x8xf32>, vector<16x8xf32>, vector<16x16xf32> -> vector<16x16xf32>
    %89 = arith.addf %88, %2 : vector<16x16xf32>
    %cst_65 = arith.constant dense<0xFF800000> : vector<16xf32>
    %90 = vector.multi_reduction <maximumf>, %89, %cst_65 [1] : vector<16x16xf32> to vector<16xf32>
    %91 = vector.shape_cast %90 : vector<16xf32> to vector<16x1xf32>
    %92 = vector.broadcast %91 : vector<16x1xf32> to vector<16x16xf32>
    %93 = arith.subf %89, %92 : vector<16x16xf32>
    %94 = math.exp %93 : vector<16x16xf32>
    %cst_66 = arith.constant dense<0.000000e+00> : vector<16x8xf32>
    %95 = tpu.matmul %94, %85, %cst_66 {dimension_numbers = #tpu.dot_dimension_numbers<[1], [0], [0], [1], [0, 0, 1, 1], [], []>} : vector<16x16xf32>, vector<16x8xf32>, vector<16x8xf32> -> vector<16x8xf32>
    %cst_67 = arith.constant dense<0.000000e+00> : vector<16xf32>
    %96 = vector.multi_reduction <add>, %94, %cst_67 [1] : vector<16x16xf32> to vector<16xf32>
    %97 = vector.shape_cast %96 : vector<16xf32> to vector<16x1xf32>
    %98 = tpu.reciprocal %97 {approx = true} : vector<16x1xf32> -> vector<16x1xf32>
    %99 = vector.broadcast %98 : vector<16x1xf32> to vector<16x8xf32>
    %100 = arith.mulf %95, %99 : vector<16x8xf32>
    %c1_68 = arith.constant 1 : index
    %c0_69 = arith.constant 0 : index
    %c0_70 = arith.constant 0 : index
    %101 = vector.load %arg9[%c1_68, %c0_69, %c0_70] : memref<4x8x32xf32, #tpu.memory_space<vmem>>, vector<1x8x32xf32>
    %102 = vector.shape_cast %101 : vector<1x8x32xf32> to vector<8x32xf32>
    %cst_71 = arith.constant dense<0.000000e+00> : vector<16x32xf32>
    %103 = tpu.matmul %100, %102, %cst_71 {dimension_numbers = #tpu.dot_dimension_numbers<[1], [0], [0], [1], [0, 0, 1, 1], [], []>} : vector<16x8xf32>, vector<8x32xf32>, vector<16x32xf32> -> vector<16x32xf32>
    %104 = arith.addf %64, %103 : vector<16x32xf32>
    %c2 = arith.constant 2 : index
    %c0_72 = arith.constant 0 : index
    %c0_73 = arith.constant 0 : index
    %105 = vector.load %arg3[%c2, %c0_72, %c0_73] : memref<4x32x8xf32, #tpu.memory_space<vmem>>, vector<1x32x8xf32>
    %106 = vector.shape_cast %105 : vector<1x32x8xf32> to vector<32x8xf32>
    %cst_74 = arith.constant dense<0.000000e+00> : vector<16x8xf32>
    %107 = tpu.matmul %25, %106, %cst_74 {dimension_numbers = #tpu.dot_dimension_numbers<[1], [0], [0], [1], [0, 0, 1, 1], [], []>} : vector<16x32xf32>, vector<32x8xf32>, vector<16x8xf32> -> vector<16x8xf32>
    %c2_75 = arith.constant 2 : index
    %c0_76 = arith.constant 0 : index
    %c0_77 = arith.constant 0 : index
    %108 = vector.load %arg6[%c2_75, %c0_76, %c0_77] : memref<4x1x8xf32, #tpu.memory_space<vmem>>, vector<1x1x8xf32>
    %109 = vector.shape_cast %108 : vector<1x1x8xf32> to vector<1x8xf32>
    %110 = vector.broadcast %109 : vector<1x8xf32> to vector<16x8xf32>
    %111 = arith.addf %107, %110 : vector<16x8xf32>
    %c2_78 = arith.constant 2 : index
    %c0_79 = arith.constant 0 : index
    %c0_80 = arith.constant 0 : index
    %112 = vector.load %arg4[%c2_78, %c0_79, %c0_80] : memref<4x32x8xf32, #tpu.memory_space<vmem>>, vector<1x32x8xf32>
    %113 = vector.shape_cast %112 : vector<1x32x8xf32> to vector<32x8xf32>
    %cst_81 = arith.constant dense<0.000000e+00> : vector<16x8xf32>
    %114 = tpu.matmul %25, %113, %cst_81 {dimension_numbers = #tpu.dot_dimension_numbers<[1], [0], [0], [1], [0, 0, 1, 1], [], []>} : vector<16x32xf32>, vector<32x8xf32>, vector<16x8xf32> -> vector<16x8xf32>
    %c2_82 = arith.constant 2 : index
    %c0_83 = arith.constant 0 : index
    %c0_84 = arith.constant 0 : index
    %115 = vector.load %arg7[%c2_82, %c0_83, %c0_84] : memref<4x1x8xf32, #tpu.memory_space<vmem>>, vector<1x1x8xf32>
    %116 = vector.shape_cast %115 : vector<1x1x8xf32> to vector<1x8xf32>
    %117 = vector.broadcast %116 : vector<1x8xf32> to vector<16x8xf32>
    %118 = arith.addf %114, %117 : vector<16x8xf32>
    %c2_85 = arith.constant 2 : index
    %c0_86 = arith.constant 0 : index
    %c0_87 = arith.constant 0 : index
    %119 = vector.load %arg5[%c2_85, %c0_86, %c0_87] : memref<4x32x8xf32, #tpu.memory_space<vmem>>, vector<1x32x8xf32>
    %120 = vector.shape_cast %119 : vector<1x32x8xf32> to vector<32x8xf32>
    %cst_88 = arith.constant dense<0.000000e+00> : vector<16x8xf32>
    %121 = tpu.matmul %24, %120, %cst_88 {dimension_numbers = #tpu.dot_dimension_numbers<[1], [0], [0], [1], [0, 0, 1, 1], [], []>} : vector<16x32xf32>, vector<32x8xf32>, vector<16x8xf32> -> vector<16x8xf32>
    %c2_89 = arith.constant 2 : index
    %c0_90 = arith.constant 0 : index
    %c0_91 = arith.constant 0 : index
    %122 = vector.load %arg8[%c2_89, %c0_90, %c0_91] : memref<4x1x8xf32, #tpu.memory_space<vmem>>, vector<1x1x8xf32>
    %123 = vector.shape_cast %122 : vector<1x1x8xf32> to vector<1x8xf32>
    %124 = vector.broadcast %123 : vector<1x8xf32> to vector<16x8xf32>
    %125 = arith.addf %121, %124 : vector<16x8xf32>
    %cst_92 = arith.constant 0.353553385 : f32
    %126 = vector.broadcast %cst_92 : f32 to vector<16x8xf32>
    %127 = arith.mulf %111, %126 : vector<16x8xf32>
    %cst_93 = arith.constant dense<0.000000e+00> : vector<16x16xf32>
    %128 = tpu.matmul %127, %118, %cst_93 {dimension_numbers = #tpu.dot_dimension_numbers<[1], [1], [0], [0], [0, 0, 1, 0], [], []>} : vector<16x8xf32>, vector<16x8xf32>, vector<16x16xf32> -> vector<16x16xf32>
    %129 = arith.addf %128, %2 : vector<16x16xf32>
    %cst_94 = arith.constant dense<0xFF800000> : vector<16xf32>
    %130 = vector.multi_reduction <maximumf>, %129, %cst_94 [1] : vector<16x16xf32> to vector<16xf32>
    %131 = vector.shape_cast %130 : vector<16xf32> to vector<16x1xf32>
    %132 = vector.broadcast %131 : vector<16x1xf32> to vector<16x16xf32>
    %133 = arith.subf %129, %132 : vector<16x16xf32>
    %134 = math.exp %133 : vector<16x16xf32>
    %cst_95 = arith.constant dense<0.000000e+00> : vector<16x8xf32>
    %135 = tpu.matmul %134, %125, %cst_95 {dimension_numbers = #tpu.dot_dimension_numbers<[1], [0], [0], [1], [0, 0, 1, 1], [], []>} : vector<16x16xf32>, vector<16x8xf32>, vector<16x8xf32> -> vector<16x8xf32>
    %cst_96 = arith.constant dense<0.000000e+00> : vector<16xf32>
    %136 = vector.multi_reduction <add>, %134, %cst_96 [1] : vector<16x16xf32> to vector<16xf32>
    %137 = vector.shape_cast %136 : vector<16xf32> to vector<16x1xf32>
    %138 = tpu.reciprocal %137 {approx = true} : vector<16x1xf32> -> vector<16x1xf32>
    %139 = vector.broadcast %138 : vector<16x1xf32> to vector<16x8xf32>
    %140 = arith.mulf %135, %139 : vector<16x8xf32>
    %c2_97 = arith.constant 2 : index
    %c0_98 = arith.constant 0 : index
    %c0_99 = arith.constant 0 : index
    %141 = vector.load %arg9[%c2_97, %c0_98, %c0_99] : memref<4x8x32xf32, #tpu.memory_space<vmem>>, vector<1x8x32xf32>
    %142 = vector.shape_cast %141 : vector<1x8x32xf32> to vector<8x32xf32>
    %cst_100 = arith.constant dense<0.000000e+00> : vector<16x32xf32>
    %143 = tpu.matmul %140, %142, %cst_100 {dimension_numbers = #tpu.dot_dimension_numbers<[1], [0], [0], [1], [0, 0, 1, 1], [], []>} : vector<16x8xf32>, vector<8x32xf32>, vector<16x32xf32> -> vector<16x32xf32>
    %144 = arith.addf %104, %143 : vector<16x32xf32>
    %c3 = arith.constant 3 : index
    %c0_101 = arith.constant 0 : index
    %c0_102 = arith.constant 0 : index
    %145 = vector.load %arg3[%c3, %c0_101, %c0_102] : memref<4x32x8xf32, #tpu.memory_space<vmem>>, vector<1x32x8xf32>
    %146 = vector.shape_cast %145 : vector<1x32x8xf32> to vector<32x8xf32>
    %cst_103 = arith.constant dense<0.000000e+00> : vector<16x8xf32>
    %147 = tpu.matmul %25, %146, %cst_103 {dimension_numbers = #tpu.dot_dimension_numbers<[1], [0], [0], [1], [0, 0, 1, 1], [], []>} : vector<16x32xf32>, vector<32x8xf32>, vector<16x8xf32> -> vector<16x8xf32>
    %c3_104 = arith.constant 3 : index
    %c0_105 = arith.constant 0 : index
    %c0_106 = arith.constant 0 : index
    %148 = vector.load %arg6[%c3_104, %c0_105, %c0_106] : memref<4x1x8xf32, #tpu.memory_space<vmem>>, vector<1x1x8xf32>
    %149 = vector.shape_cast %148 : vector<1x1x8xf32> to vector<1x8xf32>
    %150 = vector.broadcast %149 : vector<1x8xf32> to vector<16x8xf32>
    %151 = arith.addf %147, %150 : vector<16x8xf32>
    %c3_107 = arith.constant 3 : index
    %c0_108 = arith.constant 0 : index
    %c0_109 = arith.constant 0 : index
    %152 = vector.load %arg4[%c3_107, %c0_108, %c0_109] : memref<4x32x8xf32, #tpu.memory_space<vmem>>, vector<1x32x8xf32>
    %153 = vector.shape_cast %152 : vector<1x32x8xf32> to vector<32x8xf32>
    %cst_110 = arith.constant dense<0.000000e+00> : vector<16x8xf32>
    %154 = tpu.matmul %25, %153, %cst_110 {dimension_numbers = #tpu.dot_dimension_numbers<[1], [0], [0], [1], [0, 0, 1, 1], [], []>} : vector<16x32xf32>, vector<32x8xf32>, vector<16x8xf32> -> vector<16x8xf32>
    %c3_111 = arith.constant 3 : index
    %c0_112 = arith.constant 0 : index
    %c0_113 = arith.constant 0 : index
    %155 = vector.load %arg7[%c3_111, %c0_112, %c0_113] : memref<4x1x8xf32, #tpu.memory_space<vmem>>, vector<1x1x8xf32>
    %156 = vector.shape_cast %155 : vector<1x1x8xf32> to vector<1x8xf32>
    %157 = vector.broadcast %156 : vector<1x8xf32> to vector<16x8xf32>
    %158 = arith.addf %154, %157 : vector<16x8xf32>
    %c3_114 = arith.constant 3 : index
    %c0_115 = arith.constant 0 : index
    %c0_116 = arith.constant 0 : index
    %159 = vector.load %arg5[%c3_114, %c0_115, %c0_116] : memref<4x32x8xf32, #tpu.memory_space<vmem>>, vector<1x32x8xf32>
    %160 = vector.shape_cast %159 : vector<1x32x8xf32> to vector<32x8xf32>
    %cst_117 = arith.constant dense<0.000000e+00> : vector<16x8xf32>
    %161 = tpu.matmul %24, %160, %cst_117 {dimension_numbers = #tpu.dot_dimension_numbers<[1], [0], [0], [1], [0, 0, 1, 1], [], []>} : vector<16x32xf32>, vector<32x8xf32>, vector<16x8xf32> -> vector<16x8xf32>
    %c3_118 = arith.constant 3 : index
    %c0_119 = arith.constant 0 : index
    %c0_120 = arith.constant 0 : index
    %162 = vector.load %arg8[%c3_118, %c0_119, %c0_120] : memref<4x1x8xf32, #tpu.memory_space<vmem>>, vector<1x1x8xf32>
    %163 = vector.shape_cast %162 : vector<1x1x8xf32> to vector<1x8xf32>
    %164 = vector.broadcast %163 : vector<1x8xf32> to vector<16x8xf32>
    %165 = arith.addf %161, %164 : vector<16x8xf32>
    %cst_121 = arith.constant 0.353553385 : f32
    %166 = vector.broadcast %cst_121 : f32 to vector<16x8xf32>
    %167 = arith.mulf %151, %166 : vector<16x8xf32>
    %cst_122 = arith.constant dense<0.000000e+00> : vector<16x16xf32>
    %168 = tpu.matmul %167, %158, %cst_122 {dimension_numbers = #tpu.dot_dimension_numbers<[1], [1], [0], [0], [0, 0, 1, 0], [], []>} : vector<16x8xf32>, vector<16x8xf32>, vector<16x16xf32> -> vector<16x16xf32>
    %169 = arith.addf %168, %2 : vector<16x16xf32>
    %cst_123 = arith.constant dense<0xFF800000> : vector<16xf32>
    %170 = vector.multi_reduction <maximumf>, %169, %cst_123 [1] : vector<16x16xf32> to vector<16xf32>
    %171 = vector.shape_cast %170 : vector<16xf32> to vector<16x1xf32>
    %172 = vector.broadcast %171 : vector<16x1xf32> to vector<16x16xf32>
    %173 = arith.subf %169, %172 : vector<16x16xf32>
    %174 = math.exp %173 : vector<16x16xf32>
    %cst_124 = arith.constant dense<0.000000e+00> : vector<16x8xf32>
    %175 = tpu.matmul %174, %165, %cst_124 {dimension_numbers = #tpu.dot_dimension_numbers<[1], [0], [0], [1], [0, 0, 1, 1], [], []>} : vector<16x16xf32>, vector<16x8xf32>, vector<16x8xf32> -> vector<16x8xf32>
    %cst_125 = arith.constant dense<0.000000e+00> : vector<16xf32>
    %176 = vector.multi_reduction <add>, %174, %cst_125 [1] : vector<16x16xf32> to vector<16xf32>
    %177 = vector.shape_cast %176 : vector<16xf32> to vector<16x1xf32>
    %178 = tpu.reciprocal %177 {approx = true} : vector<16x1xf32> -> vector<16x1xf32>
    %179 = vector.broadcast %178 : vector<16x1xf32> to vector<16x8xf32>
    %180 = arith.mulf %175, %179 : vector<16x8xf32>
    %c3_126 = arith.constant 3 : index
    %c0_127 = arith.constant 0 : index
    %c0_128 = arith.constant 0 : index
    %181 = vector.load %arg9[%c3_126, %c0_127, %c0_128] : memref<4x8x32xf32, #tpu.memory_space<vmem>>, vector<1x8x32xf32>
    %182 = vector.shape_cast %181 : vector<1x8x32xf32> to vector<8x32xf32>
    %cst_129 = arith.constant dense<0.000000e+00> : vector<16x32xf32>
    %183 = tpu.matmul %180, %182, %cst_129 {dimension_numbers = #tpu.dot_dimension_numbers<[1], [0], [0], [1], [0, 0, 1, 1], [], []>} : vector<16x8xf32>, vector<8x32xf32>, vector<16x32xf32> -> vector<16x32xf32>
    %184 = arith.addf %144, %183 : vector<16x32xf32>
    %185 = arith.addf %0, %184 : vector<16x32xf32>
    %c0_130 = arith.constant 0 : index
    %c0_131 = arith.constant 0 : index
    %186 = vector.load %arg10[%c0_130, %c0_131] : memref<1x32xf32, #tpu.memory_space<vmem>>, vector<1x32xf32>
    %187 = vector.broadcast %186 : vector<1x32xf32> to vector<16x32xf32>
    %188 = arith.addf %185, %187 : vector<16x32xf32>
    %c0_132 = arith.constant 0 : index
    %c0_133 = arith.constant 0 : index
    %189 = vector.load %arg17[%c0_132, %c0_133] : memref<1x32xf32, #tpu.memory_space<vmem>>, vector<1x32xf32>
    %c0_134 = arith.constant 0 : index
    %c0_135 = arith.constant 0 : index
    %190 = vector.load %arg18[%c0_134, %c0_135] : memref<1x32xf32, #tpu.memory_space<vmem>>, vector<1x32xf32>
    %cst_136 = arith.constant dense<0.000000e+00> : vector<16xf32>
    %191 = vector.multi_reduction <add>, %188, %cst_136 [1] : vector<16x32xf32> to vector<16xf32>
    %192 = vector.shape_cast %191 : vector<16xf32> to vector<16x1xf32>
    %cst_137 = arith.constant 3.200000e+01 : f32
    %193 = vector.broadcast %cst_137 : f32 to vector<16x1xf32>
    %194 = arith.divf %192, %193 : vector<16x1xf32>
    %195 = vector.broadcast %194 : vector<16x1xf32> to vector<16x32xf32>
    %196 = arith.subf %188, %195 : vector<16x32xf32>
    %197 = arith.mulf %196, %196 : vector<16x32xf32>
    %cst_138 = arith.constant dense<0.000000e+00> : vector<16xf32>
    %198 = vector.multi_reduction <add>, %197, %cst_138 [1] : vector<16x32xf32> to vector<16xf32>
    %199 = vector.shape_cast %198 : vector<16xf32> to vector<16x1xf32>
    %cst_139 = arith.constant 3.200000e+01 : f32
    %200 = vector.broadcast %cst_139 : f32 to vector<16x1xf32>
    %201 = arith.divf %199, %200 : vector<16x1xf32>
    %cst_140 = arith.constant 9.99999974E-6 : f32
    %202 = vector.broadcast %cst_140 : f32 to vector<16x1xf32>
    %203 = arith.addf %201, %202 : vector<16x1xf32>
    %204 = math.rsqrt %203 : vector<16x1xf32>
    %205 = vector.broadcast %204 : vector<16x1xf32> to vector<16x32xf32>
    %206 = arith.mulf %196, %205 : vector<16x32xf32>
    %207 = vector.broadcast %189 : vector<1x32xf32> to vector<16x32xf32>
    %208 = arith.mulf %206, %207 : vector<16x32xf32>
    %209 = vector.broadcast %190 : vector<1x32xf32> to vector<16x32xf32>
    %210 = arith.addf %208, %209 : vector<16x32xf32>
    %c0_141 = arith.constant 0 : index
    %c0_142 = arith.constant 0 : index
    %211 = vector.load %arg11[%c0_141, %c0_142] : memref<32x64xf32, #tpu.memory_space<vmem>>, vector<32x64xf32>
    %cst_143 = arith.constant dense<0.000000e+00> : vector<16x64xf32>
    %212 = tpu.matmul %210, %211, %cst_143 {dimension_numbers = #tpu.dot_dimension_numbers<[1], [0], [0], [1], [0, 0, 1, 1], [], []>} : vector<16x32xf32>, vector<32x64xf32>, vector<16x64xf32> -> vector<16x64xf32>
    %c0_144 = arith.constant 0 : index
    %c0_145 = arith.constant 0 : index
    %213 = vector.load %arg12[%c0_144, %c0_145] : memref<1x64xf32, #tpu.memory_space<vmem>>, vector<1x64xf32>
    %214 = vector.broadcast %213 : vector<1x64xf32> to vector<16x64xf32>
    %215 = arith.addf %212, %214 : vector<16x64xf32>
    %cst_146 = arith.constant 0.000000e+00 : f32
    %216 = vector.broadcast %cst_146 : f32 to vector<16x64xf32>
    %217 = arith.maximumf %215, %216 : vector<16x64xf32>
    %c0_147 = arith.constant 0 : index
    %c0_148 = arith.constant 0 : index
    %218 = vector.load %arg13[%c0_147, %c0_148] : memref<64x32xf32, #tpu.memory_space<vmem>>, vector<64x32xf32>
    %cst_149 = arith.constant dense<0.000000e+00> : vector<16x32xf32>
    %219 = tpu.matmul %217, %218, %cst_149 {dimension_numbers = #tpu.dot_dimension_numbers<[1], [0], [0], [1], [0, 0, 1, 1], [], []>} : vector<16x64xf32>, vector<64x32xf32>, vector<16x32xf32> -> vector<16x32xf32>
    %c0_150 = arith.constant 0 : index
    %c0_151 = arith.constant 0 : index
    %220 = vector.load %arg14[%c0_150, %c0_151] : memref<1x32xf32, #tpu.memory_space<vmem>>, vector<1x32xf32>
    %221 = vector.broadcast %220 : vector<1x32xf32> to vector<16x32xf32>
    %222 = arith.addf %219, %221 : vector<16x32xf32>
    %223 = arith.addf %188, %222 : vector<16x32xf32>
    %c0_152 = arith.constant 0 : index
    %c0_153 = arith.constant 0 : index
    %224 = vector.load %arg19[%c0_152, %c0_153] : memref<16x32xf32, #tpu.memory_space<vmem>>, vector<16x32xf32>
    tpu.vector_store %arg19[%c0_152, %c0_153], %223 {strides = array<i32>} : memref<16x32xf32, #tpu.memory_space<vmem>>, vector<16x32xf32>,
    return
  }
}

</mosaic_0001>

<llo_original>
// kernel: transformer_encoder_layer.1
$region0: #{transformer_encoder_layer.1}
  #allocation0 [shape = 'u32[]', space=smem, size = 0x4, offset = 0x4, fixed_abs, tag = 'smem constant byte address 0x4 - core index']
  #allocation1 [shape = 'u32[144,128]{1,0:T(1,128)}', space=vmem, size = 0x12000, scoped, tag = 'internal scratch']
  %s0 = inlined_call_operand.vmem [shape: f32[16,32], index: 0, kind: input, shape index: {}]
  %s1 = inlined_call_operand.vmem [shape: f32[16,32], index: 1, kind: input, shape index: {}]
  %s2 = inlined_call_operand.vmem [shape: f32[16,16], index: 2, kind: input, shape index: {}]
  %s3 = inlined_call_operand.vmem [shape: f32[4,32,8], index: 3, kind: input, shape index: {}]
  %s4 = inlined_call_operand.vmem [shape: f32[4,32,8], index: 4, kind: input, shape index: {}]
  %s5 = inlined_call_operand.vmem [shape: f32[4,32,8], index: 5, kind: input, shape index: {}]
  %s6 = inlined_call_operand.vmem [shape: f32[4,1,8], index: 6, kind: input, shape index: {}]
  %s7 = inlined_call_operand.vmem [shape: f32[4,1,8], index: 7, kind: input, shape index: {}]
  %s8 = inlined_call_operand.vmem [shape: f32[4,1,8], index: 8, kind: input, shape index: {}]
  %s9 = inlined_call_operand.vmem [shape: f32[4,8,32], index: 9, kind: input, shape index: {}]
  %s10 = inlined_call_operand.vmem [shape: f32[1,32], index: 10, kind: input, shape index: {}]
  %s11 = inlined_call_operand.vmem [shape: f32[32,64], index: 11, kind: input, shape index: {}]
  %s12 = inlined_call_operand.vmem [shape: f32[1,64], index: 12, kind: input, shape index: {}]
  %s13 = inlined_call_operand.vmem [shape: f32[64,32], index: 13, kind: input, shape index: {}]
  %s14 = inlined_call_operand.vmem [shape: f32[1,32], index: 14, kind: input, shape index: {}]
  %s15 = inlined_call_operand.vmem [shape: f32[1,32], index: 15, kind: input, shape index: {}]
  %s16 = inlined_call_operand.vmem [shape: f32[1,32], index: 16, kind: input, shape index: {}]
  %s17 = inlined_call_operand.vmem [shape: f32[1,32], index: 17, kind: input, shape index: {}]
  %s18 = inlined_call_operand.vmem [shape: f32[1,32], index: 18, kind: input, shape index: {}]
  %s19 = inlined_call_operand.hbm [shape: f32[16,32], index: 19, kind: output, shape index: {}]
  %s20 = sld [smem:[#allocation0]]
  $region86: #{transformer_encoder_layer.1} parent=0
    _
  %s22 = ssub.s32 1, %s20
  %s23 = scalar_select 0, %s22, %s20
  $region1: #{transformer_encoder_layer.1} parent=0
    #allocation2 [shape = 'u8[8192]{0}', space=vmem, size = 0x2000, scoped, tag = 'output window, operand 0, single buffered']
    #allocation3 [shape = 's32[1]{0}', space=sflag, size = 0x4, scoped, tag = 'scoped memory for transformer_encoder_layer.1']
    %24 = vsyncpa [#allocation3], 0
    // Predicated region
    $region2: #{transformer_encoder_layer.1} parent=1 // pred_check
      _
    $region3: #{transformer_encoder_layer.1} parent=1 // pred_check_branch
      %26 = sbr.rel (0) target = $region5
    $region4: #{transformer_encoder_layer.1} parent=1 // pred_region
      _
    $region5: #{transformer_encoder_layer.1} parent=1 // pred_fallthru
      _
    // Predicated region
    $region6: #{transformer_encoder_layer.1} parent=1 // pred_check
      _
    $region7: #{transformer_encoder_layer.1} parent=1 // pred_check_branch
      %28 = sbr.rel (0) target = $region9
    $region8: #{transformer_encoder_layer.1} parent=1 // pred_region
      _
    $region9: #{transformer_encoder_layer.1} parent=1 // pred_fallthru
      _
    // Predicated region
    $region10: #{transformer_encoder_layer.1} parent=1 // pred_check
      _
    $region11: #{transformer_encoder_layer.1} parent=1 // pred_check_branch
      %30 = sbr.rel (0) target = $region13
    $region12: #{transformer_encoder_layer.1} parent=1 // pred_region
      _
    $region13: #{transformer_encoder_layer.1} parent=1 // pred_fallthru
      _
    // Predicated region
    $region14: #{transformer_encoder_layer.1} parent=1 // pred_check
      _
    $region15: #{transformer_encoder_layer.1} parent=1 // pred_check_branch
      %32 = sbr.rel (0) target = $region17
    $region16: #{transformer_encoder_layer.1} parent=1 // pred_region
      _
    $region17: #{transformer_encoder_layer.1} parent=1 // pred_fallthru
      _
    // Predicated region
    $region18: #{transformer_encoder_layer.1} parent=1 // pred_check
      _
    $region19: #{transformer_encoder_layer.1} parent=1 // pred_check_branch
      %34 = sbr.rel (0) target = $region21
    $region20: #{transformer_encoder_layer.1} parent=1 // pred_region
      _
    $region21: #{transformer_encoder_layer.1} parent=1 // pred_fallthru
      _
    // Predicated region
    $region22: #{transformer_encoder_layer.1} parent=1 // pred_check
      _
    $region23: #{transformer_encoder_layer.1} parent=1 // pred_check_branch
      %36 = sbr.rel (0) target = $region25
    $region24: #{transformer_encoder_layer.1} parent=1 // pred_region
      _
    $region25: #{transformer_encoder_layer.1} parent=1 // pred_fallthru
      _
    // Predicated region
    $region26: #{transformer_encoder_layer.1} parent=1 // pred_check
      _
    $region27: #{transformer_encoder_layer.1} parent=1 // pred_check_branch
      %38 = sbr.rel (0) target = $region29
    $region28: #{transformer_encoder_layer.1} parent=1 // pred_region
      _
    $region29: #{transformer_encoder_layer.1} parent=1 // pred_fallthru
      _
    // Predicated region
    $region30: #{transformer_encoder_layer.1} parent=1 // pred_check
      _
    $region31: #{transformer_encoder_layer.1} parent=1 // pred_check_branch
      %40 = sbr.rel (0) target = $region33
    $region32: #{transformer_encoder_layer.1} parent=1 // pred_region
      _
    $region33: #{transformer_encoder_layer.1} parent=1 // pred_fallthru
      _
    // Predicated region
    $region34: #{transformer_encoder_layer.1} parent=1 // pred_check
      _
    $region35: #{transformer_encoder_layer.1} parent=1 // pred_check_branch
      %42 = sbr.rel (0) target = $region37
    $region36: #{transformer_encoder_layer.1} parent=1 // pred_region
      _
    $region37: #{transformer_encoder_layer.1} parent=1 // pred_fallthru
      _
    // Predicated region
    $region38: #{transformer_encoder_layer.1} parent=1 // pred_check
      _
    $region39: #{transformer_encoder_layer.1} parent=1 // pred_check_branch
      %44 = sbr.rel (0) target = $region41
    $region40: #{transformer_encoder_layer.1} parent=1 // pred_region
      _
    $region41: #{transformer_encoder_layer.1} parent=1 // pred_fallthru
      _
    // Predicated region
    $region42: #{transformer_encoder_layer.1} parent=1 // pred_check
      _
    $region43: #{transformer_encoder_layer.1} parent=1 // pred_check_branch
      %46 = sbr.rel (0) target = $region45
    $region44: #{transformer_encoder_layer.1} parent=1 // pred_region
      _
    $region45: #{transformer_encoder_layer.1} parent=1 // pred_fallthru
      _
    // Predicated region
    $region46: #{transformer_encoder_layer.1} parent=1 // pred_check
      _
    $region47: #{transformer_encoder_layer.1} parent=1 // pred_check_branch
      %48 = sbr.rel (0) target = $region49
    $region48: #{transformer_encoder_layer.1} parent=1 // pred_region
      _
    $region49: #{transformer_encoder_layer.1} parent=1 // pred_fallthru
      _
    // Predicated region
    $region50: #{transformer_encoder_layer.1} parent=1 // pred_check
      _
    $region51: #{transformer_encoder_layer.1} parent=1 // pred_check_branch
      %50 = sbr.rel (0) target = $region53
    $region52: #{transformer_encoder_layer.1} parent=1 // pred_region
      _
    $region53: #{transformer_encoder_layer.1} parent=1 // pred_fallthru
      _
    // Predicated region
    $region54: #{transformer_encoder_layer.1} parent=1 // pred_check
      _
    $region55: #{transformer_encoder_layer.1} parent=1 // pred_check_branch
      %52 = sbr.rel (0) target = $region57
    $region56: #{transformer_encoder_layer.1} parent=1 // pred_region
      _
    $region57: #{transformer_encoder_layer.1} parent=1 // pred_fallthru
      _
    // Predicated region
    $region58: #{transformer_encoder_layer.1} parent=1 // pred_check
      _
    $region59: #{transformer_encoder_layer.1} parent=1 // pred_check_branch
      %54 = sbr.rel (0) target = $region61
    $region60: #{transformer_encoder_layer.1} parent=1 // pred_region
      _
    $region61: #{transformer_encoder_layer.1} parent=1 // pred_fallthru
      _
    // Predicated region
    $region62: #{transformer_encoder_layer.1} parent=1 // pred_check
      _
    $region63: #{transformer_encoder_layer.1} parent=1 // pred_check_branch
      %56 = sbr.rel (0) target = $region65
    $region64: #{transformer_encoder_layer.1} parent=1 // pred_region
      _
    $region65: #{transformer_encoder_layer.1} parent=1 // pred_fallthru
      _
    // Predicated region
    $region66: #{transformer_encoder_layer.1} parent=1 // pred_check
      _
    $region67: #{transformer_encoder_layer.1} parent=1 // pred_check_branch
      %58 = sbr.rel (0) target = $region69
    $region68: #{transformer_encoder_layer.1} parent=1 // pred_region
      _
    $region69: #{transformer_encoder_layer.1} parent=1 // pred_fallthru
      _
    // Predicated region
    $region70: #{transformer_encoder_layer.1} parent=1 // pred_check
      _
    $region71: #{transformer_encoder_layer.1} parent=1 // pred_check_branch
      %60 = sbr.rel (0) target = $region73
    $region72: #{transformer_encoder_layer.1} parent=1 // pred_region
      _
    $region73: #{transformer_encoder_layer.1} parent=1 // pred_fallthru
      _
    // Predicated region
    $region74: #{transformer_encoder_layer.1} parent=1 // pred_check
      _
    $region75: #{transformer_encoder_layer.1} parent=1 // pred_check_branch
      %62 = sbr.rel (0) target = $region77
    $region76: #{transformer_encoder_layer.1} parent=1 // pred_region
      _
    $region77: #{transformer_encoder_layer.1} parent=1 // pred_fallthru
      _
    %v63 = vld [vmem:[%s0] sm:$0xff]
    %v64 = vld [vmem:[%s0 + $0x8] sm:$0xff]
    %v65 = vld [vmem:[%s1] sm:$0xff]
    %v66 = vld [vmem:[%s1 + $0x8] sm:$0xff]
    %v67 = vld [vmem:[%s2] sm:$0xff]
    %v68 = vld [vmem:[%s2 + $0x8] sm:$0xff]
    %v69 = vld [vmem:[%s15] sm:$0x1]
    %v70 = vld [vmem:[%s16] sm:$0x1]
    %vm71 = vcmask 261120
    %v72 = vsel %vm71, %v63, 0.0
    %73 = vadd.xlane.f32.xlu0 %v72
    %v74 = vpop.xlane.xlu0 %73
    %v75 = vsel %vm71, %v64, 0.0
    %76 = vadd.xlane.f32.xlu0 %v75
    %v77 = vpop.xlane.xlu0 %76
    %v78 = vrcp.pop 32.0
    %v79 = vmul.f32 %v74, %v78
    %v80 = vmul.f32 %v77, %v78
    %v81 = vsub.f32 %v63, %v79
    %v82 = vsub.f32 %v64, %v80
    %v83 = vmul.f32 %v81, %v81
    %v84 = vmul.f32 %v82, %v82
    %v85 = vsel %vm71, %v83, 0.0
    %86 = vadd.xlane.f32.xlu0 %v85
    %v87 = vpop.xlane.xlu0 %86
    %v88 = vsel %vm71, %v84, 0.0
    %89 = vadd.xlane.f32.xlu0 %v88
    %v90 = vpop.xlane.xlu0 %89
    %v91 = vmul.f32 %v87, %v78
    %v92 = vmul.f32 %v90, %v78
    %v93 = vadd.f32 %v91, 1e-05
    %v94 = vadd.f32 %v92, 1e-05
    %v95 = vrsqrt.pop %v93
    %v96 = vrsqrt.pop %v94
    %v97 = vmul.f32 %v81, %v95
    %v98 = vmul.f32 %v82, %v96
    %v100 = vlaneseq
    %v101 = vshrl.u32 %v100, 7
    %v102 = vsub.s32 0, %v101
    %v103 = vrot.slane %v69, %v102
    %v105 = vmul.f32 %v97, %v103
    %v106 = vmul.f32 %v98, %v103
    %v108 = vlaneseq
    %v109 = vshrl.u32 %v108, 7
    %v110 = vsub.s32 0, %v109
    %v111 = vrot.slane %v70, %v110
    %v113 = vadd.f32 %v105, %v111
    %v114 = vadd.f32 %v106, %v111
    %v115 = vadd.f32 %v113, %v65
    %v116 = vadd.f32 %v114, %v66
    %v117 = vld [vmem:[%s3] sm:$0xff]
    %v118 = vld [vmem:[%s3 + $0x8] sm:$0xff]
    %v119 = vld [vmem:[%s3 + $0x10] sm:$0xff]
    %v120 = vld [vmem:[%s3 + $0x18] sm:$0xff]
    %v121 = vld [vmem:[%s6] sm:$0x1]
    %v123 = vlaneseq
    %v124 = vshrl.u32 %v123, 7
    %v125 = vsub.s32 0, %v124
    %v126 = vrot.slane %v121, %v125
    %v129 = vsel %vm71, %v115, 0
    %v132 = vsel %vm71, %v116, 0
    %134 = vmatprep.subr.mxu0 0.0
    %135 = vmatpush1.msra.mxu0 %v117
    %136 = vmatprep.subr.mxu0 0.0
    %137 = vmatpush1.msra.mxu0 %v118
    %138 = vmatprep.subr.mxu0 0.0
    %139 = vmatpush1.msra.mxu0 %v119
    %140 = vmatprep.subr.mxu0 0.0
    %141 = vmatpush1.msra.mxu0 %v120
    %142 = vmatprep.subr.mxu0 0.0
    %143 = vmatpush1.msra.mxu0 0.0
    %144 = vmatprep.subr.mxu0 0.0
    %145 = vmatpush1.msra.mxu0 0.0
    %146 = vmatprep.subr.mxu0 0.0
    %147 = vmatpush1.msra.mxu0 0.0
    %148 = vmatprep.subr.mxu0 0.0
    %149 = vmatpush1.msra.mxu0 0.0
    %150 = vmatprep.subr.mxu0 0.0
    %151 = vmatpush1.msra.mxu0 0.0
    %152 = vmatprep.subr.mxu0 0.0
    %153 = vmatpush1.msra.mxu0 0.0
    %154 = vmatprep.subr.mxu0 0.0
    %155 = vmatpush1.msra.mxu0 0.0
    %156 = vmatprep.subr.mxu0 0.0
    %157 = vmatpush1.msra.mxu0 0.0
    %158 = vmatprep.subr.mxu0 0.0
    %159 = vmatpush1.msra.mxu0 0.0
    %160 = vmatprep.subr.mxu0 0.0
    %161 = vmatpush1.msra.mxu0 0.0
    %162 = vmatprep.subr.mxu0 0.0
    %163 = vmatpush1.msra.mxu0 0.0
    %164 = vmatprep.subr.mxu0 0.0
    %165 = vmatpush1.msra.mxu0 0.0
    %166 = vmatprep.subr.mxu0 0.0
    %167 = vmatpush1.msra.mxu0 0.0
    %168 = vmatprep.subr.mxu0 0.0
    %169 = vmatpush1.msra.mxu0 0.0
    %170 = vmatprep.subr.mxu0 0.0
    %171 = vmatpush1.msra.mxu0 0.0
    %172 = vmatprep.subr.mxu0 0.0
    %173 = vmatpush1.msra.mxu0 0.0
    %174 = vmatprep.subr.mxu0 0.0
    %175 = vmatpush1.msra.mxu0 0.0
    %176 = vmatprep.subr.mxu0 0.0
    %177 = vmatpush1.msra.mxu0 0.0
    %178 = vmatprep.subr.mxu0 0.0
    %179 = vmatpush1.msra.mxu0 0.0
    %180 = vmatprep.subr.mxu0 0.0
    %181 = vmatpush1.msra.mxu0 0.0
    %182 = vmatprep.subr.mxu0 0.0
    %183 = vmatpush1.msra.mxu0 0.0
    %184 = vmatprep.subr.mxu0 0.0
    %185 = vmatpush1.msra.mxu0 0.0
    %186 = vmatprep.subr.mxu0 0.0
    %187 = vmatpush1.msra.mxu0 0.0
    %188 = vmatprep.subr.mxu0 0.0
    %189 = vmatpush1.msra.mxu0 0.0
    %190 = vmatprep.subr.mxu0 0.0
    %191 = vmatpush1.msra.mxu0 0.0
    %192 = vmatprep.subr.mxu0 0.0
    %193 = vmatpush1.msra.mxu0 0.0
    %194 = vmatprep.subr.mxu0 0.0
    %195 = vmatpush1.msra.mxu0 0.0
    %196 = vmatprep.subr.mxu0 0.0
    %197 = vmatpush1.msra.mxu0 0.0
    %198 = vmatprep.mubr.f32.mxu0 0.0
    %199 = vmatmul.mubr.f32.gmra.mrb[0].mxu0 %v129
    %v200 = vpop.f32.mrb[0].mxu0
    %v201 = vadd.f32 %v126, %v200
    %v202 = vpop.f32.mrb[0].mxu0
    %203 = vmatprep.mubr.f32.mxu0 0.0
    %204 = vmatmul.mubr.f32.gmra.mrb[0].mxu0 %v132
    %v205 = vpop.f32.mrb[0].mxu0
    %v206 = vadd.f32 %v126, %v205
    %v207 = vpop.f32.mrb[0].mxu0
    %208 = vdwg.mxu0
    %v209 = vld [vmem:[%s4] sm:$0xff]
    %v210 = vld [vmem:[%s4 + $0x8] sm:$0xff]
    %v211 = vld [vmem:[%s4 + $0x10] sm:$0xff]
    %v212 = vld [vmem:[%s4 + $0x18] sm:$0xff]
    %v213 = vld [vmem:[%s7] sm:$0x1]
    %v215 = vlaneseq
    %v216 = vshrl.u32 %v215, 7
    %v217 = vsub.s32 0, %v216
    %v218 = vrot.slane %v213, %v217
    %220 = vmatprep.subr.mxu0 0.0
    %221 = vmatpush1.msra.mxu0 %v209
    %222 = vmatprep.subr.mxu0 0.0
    %223 = vmatpush1.msra.mxu0 %v210
    %224 = vmatprep.subr.mxu0 0.0
    %225 = vmatpush1.msra.mxu0 %v211
    %226 = vmatprep.subr.mxu0 0.0
    %227 = vmatpush1.msra.mxu0 %v212
    %228 = vmatprep.subr.mxu0 0.0
    %229 = vmatpush1.msra.mxu0 0.0
    %230 = vmatprep.subr.mxu0 0.0
    %231 = vmatpush1.msra.mxu0 0.0
    %232 = vmatprep.subr.mxu0 0.0
    %233 = vmatpush1.msra.mxu0 0.0
    %234 = vmatprep.subr.mxu0 0.0
    %235 = vmatpush1.msra.mxu0 0.0
    %236 = vmatprep.subr.mxu0 0.0
    %237 = vmatpush1.msra.mxu0 0.0
    %238 = vmatprep.subr.mxu0 0.0
    %239 = vmatpush1.msra.mxu0 0.0
    %240 = vmatprep.subr.mxu0 0.0
    %241 = vmatpush1.msra.mxu0 0.0
    %242 = vmatprep.subr.mxu0 0.0
    %243 = vmatpush1.msra.mxu0 0.0
    %244 = vmatprep.subr.mxu0 0.0
    %245 = vmatpush1.msra.mxu0 0.0
    %246 = vmatprep.subr.mxu0 0.0
    %247 = vmatpush1.msra.mxu0 0.0
    %248 = vmatprep.subr.mxu0 0.0
    %249 = vmatpush1.msra.mxu0 0.0
    %250 = vmatprep.subr.mxu0 0.0
    %251 = vmatpush1.msra.mxu0 0.0
    %252 = vmatprep.subr.mxu0 0.0
    %253 = vmatpush1.msra.mxu0 0.0
    %254 = vmatprep.subr.mxu0 0.0
    %255 = vmatpush1.msra.mxu0 0.0
    %256 = vmatprep.subr.mxu0 0.0
    %257 = vmatpush1.msra.mxu0 0.0
    %258 = vmatprep.subr.mxu0 0.0
    %259 = vmatpush1.msra.mxu0 0.0
    %260 = vmatprep.subr.mxu0 0.0
    %261 = vmatpush1.msra.mxu0 0.0
    %262 = vmatprep.subr.mxu0 0.0
    %263 = vmatpush1.msra.mxu0 0.0
    %264 = vmatprep.subr.mxu0 0.0
    %265 = vmatpush1.msra.mxu0 0.0
    %266 = vmatprep.subr.mxu0 0.0
    %267 = vmatpush1.msra.mxu0 0.0
    %268 = vmatprep.subr.mxu0 0.0
    %269 = vmatpush1.msra.mxu0 0.0
    %270 = vmatprep.subr.mxu0 0.0
    %271 = vmatpush1.msra.mxu0 0.0
    %272 = vmatprep.subr.mxu0 0.0
    %273 = vmatpush1.msra.mxu0 0.0
    %274 = vmatprep.subr.mxu0 0.0
    %275 = vmatpush1.msra.mxu0 0.0
    %276 = vmatprep.subr.mxu0 0.0
    %277 = vmatpush1.msra.mxu0 0.0
    %278 = vmatprep.subr.mxu0 0.0
    %279 = vmatpush1.msra.mxu0 0.0
    %280 = vmatprep.subr.mxu0 0.0
    %281 = vmatpush1.msra.mxu0 0.0
    %282 = vmatprep.subr.mxu0 0.0
    %283 = vmatpush1.msra.mxu0 0.0
    %284 = vmatprep.mubr.f32.mxu0 0.0
    %285 = vmatmul.mubr.f32.gmra.mrb[0].mxu0 %v129
    %v286 = vpop.f32.mrb[0].mxu0
    %v287 = vadd.f32 %v218, %v286
    %v288 = vpop.f32.mrb[0].mxu0
    %289 = vmatprep.mubr.f32.mxu0 0.0
    %290 = vmatmul.mubr.f32.gmra.mrb[0].mxu0 %v132
    %v291 = vpop.f32.mrb[0].mxu0
    %v292 = vadd.f32 %v218, %v291
    %v293 = vpop.f32.mrb[0].mxu0
    %294 = vdwg.mxu0
    %v295 = vld [vmem:[%s5] sm:$0xff]
    %v296 = vld [vmem:[%s5 + $0x8] sm:$0xff]
    %v297 = vld [vmem:[%s5 + $0x10] sm:$0xff]
    %v298 = vld [vmem:[%s5 + $0x18] sm:$0xff]
    %v299 = vld [vmem:[%s8] sm:$0x1]
    %v301 = vlaneseq
    %v302 = vshrl.u32 %v301, 7
    %v303 = vsub.s32 0, %v302
    %v304 = vrot.slane %v299, %v303
    %v307 = vsel %vm71, %v113, 0
    %v310 = vsel %vm71, %v114, 0
    %312 = vmatprep.subr.mxu0 0.0
    %313 = vmatpush1.msra.mxu0 %v295
    %314 = vmatprep.subr.mxu0 0.0
    %315 = vmatpush1.msra.mxu0 %v296
    %316 = vmatprep.subr.mxu0 0.0
    %317 = vmatpush1.msra.mxu0 %v297
    %318 = vmatprep.subr.mxu0 0.0
    %319 = vmatpush1.msra.mxu0 %v298
    %320 = vmatprep.subr.mxu0 0.0
    %321 = vmatpush1.msra.mxu0 0.0
    %322 = vmatprep.subr.mxu0 0.0
    %323 = vmatpush1.msra.mxu0 0.0
    %324 = vmatprep.subr.mxu0 0.0
    %325 = vmatpush1.msra.mxu0 0.0
    %326 = vmatprep.subr.mxu0 0.0
    %327 = vmatpush1.msra.mxu0 0.0
    %328 = vmatprep.subr.mxu0 0.0
    %329 = vmatpush1.msra.mxu0 0.0
    %330 = vmatprep.subr.mxu0 0.0
    %331 = vmatpush1.msra.mxu0 0.0
    %332 = vmatprep.subr.mxu0 0.0
    %333 = vmatpush1.msra.mxu0 0.0
    %334 = vmatprep.subr.mxu0 0.0
    %335 = vmatpush1.msra.mxu0 0.0
    %336 = vmatprep.subr.mxu0 0.0
    %337 = vmatpush1.msra.mxu0 0.0
    %338 = vmatprep.subr.mxu0 0.0
    %339 = vmatpush1.msra.mxu0 0.0
    %340 = vmatprep.subr.mxu0 0.0
    %341 = vmatpush1.msra.mxu0 0.0
    %342 = vmatprep.subr.mxu0 0.0
    %343 = vmatpush1.msra.mxu0 0.0
    %344 = vmatprep.subr.mxu0 0.0
    %345 = vmatpush1.msra.mxu0 0.0
    %346 = vmatprep.subr.mxu0 0.0
    %347 = vmatpush1.msra.mxu0 0.0
    %348 = vmatprep.subr.mxu0 0.0
    %349 = vmatpush1.msra.mxu0 0.0
    %350 = vmatprep.subr.mxu0 0.0
    %351 = vmatpush1.msra.mxu0 0.0
    %352 = vmatprep.subr.mxu0 0.0
    %353 = vmatpush1.msra.mxu0 0.0
    %354 = vmatprep.subr.mxu0 0.0
    %355 = vmatpush1.msra.mxu0 0.0
    %356 = vmatprep.subr.mxu0 0.0
    %357 = vmatpush1.msra.mxu0 0.0
    %358 = vmatprep.subr.mxu0 0.0
    %359 = vmatpush1.msra.mxu0 0.0
    %360 = vmatprep.subr.mxu0 0.0
    %361 = vmatpush1.msra.mxu0 0.0
    %362 = vmatprep.subr.mxu0 0.0
    %363 = vmatpush1.msra.mxu0 0.0
    %364 = vmatprep.subr.mxu0 0.0
    %365 = vmatpush1.msra.mxu0 0.0
    %366 = vmatprep.subr.mxu0 0.0
    %367 = vmatpush1.msra.mxu0 0.0
    %368 = vmatprep.subr.mxu0 0.0
    %369 = vmatpush1.msra.mxu0 0.0
    %370 = vmatprep.subr.mxu0 0.0
    %371 = vmatpush1.msra.mxu0 0.0
    %372 = vmatprep.subr.mxu0 0.0
    %373 = vmatpush1.msra.mxu0 0.0
    %374 = vmatprep.subr.mxu0 0.0
    %375 = vmatpush1.msra.mxu0 0.0
    %376 = vmatprep.mubr.f32.mxu0 0.0
    %377 = vmatmul.mubr.f32.gmra.mrb[0].mxu0 %v307
    %v378 = vpop.f32.mrb[0].mxu0
    %v379 = vadd.f32 %v304, %v378
    %v380 = vpop.f32.mrb[0].mxu0
    %381 = vmatprep.mubr.f32.mxu0 0.0
    %382 = vmatmul.mubr.f32.gmra.mrb[0].mxu0 %v310
    %v383 = vpop.f32.mrb[0].mxu0
    %v384 = vadd.f32 %v304, %v383
    %v385 = vpop.f32.mrb[0].mxu0
    %386 = vdwg.mxu0
    %v387 = vmul.f32 %v201, 0.35355338
    %v388 = vmul.f32 %v206, 0.35355338
    %vm389 = vcmask 64512
    %v391 = vsel %vm389, %v387, 0
    %v394 = vsel %vm389, %v388, 0
    %v397 = vsel %vm389, %v287, 0
    %v400 = vsel %vm389, %v292, 0
    %402 = vmatprep.subr.mxu0 0.0
    %403 = vmatpush1.xpose.msra.mxu0 %v397
    %404 = vmatprep.subr.mxu0 0.0
    %405 = vmatpush1.xpose.msra.mxu0 %v400
    %406 = vmatprep.subr.mxu0 0.0
    %407 = vmatpush1.xpose.msra.mxu0 0.0
    %408 = vmatprep.subr.mxu0 0.0
    %409 = vmatpush1.xpose.msra.mxu0 0.0
    %410 = vmatprep.subr.mxu0 0.0
    %411 = vmatpush1.xpose.msra.mxu0 0.0
    %412 = vmatprep.subr.mxu0 0.0
    %413 = vmatpush1.xpose.msra.mxu0 0.0
    %414 = vmatprep.subr.mxu0 0.0
    %415 = vmatpush1.xpose.msra.mxu0 0.0
    %416 = vmatprep.subr.mxu0 0.0
    %417 = vmatpush1.xpose.msra.mxu0 0.0
    %418 = vmatprep.subr.mxu0 0.0
    %419 = vmatpush1.xpose.msra.mxu0 0.0
    %420 = vmatprep.subr.mxu0 0.0
    %421 = vmatpush1.xpose.msra.mxu0 0.0
    %422 = vmatprep.subr.mxu0 0.0
    %423 = vmatpush1.xpose.msra.mxu0 0.0
    %424 = vmatprep.subr.mxu0 0.0
    %425 = vmatpush1.xpose.msra.mxu0 0.0
    %426 = vmatprep.subr.mxu0 0.0
    %427 = vmatpush1.xpose.msra.mxu0 0.0
    %428 = vmatprep.subr.mxu0 0.0
    %429 = vmatpush1.xpose.msra.mxu0 0.0
    %430 = vmatprep.subr.mxu0 0.0
    %431 = vmatpush1.xpose.msra.mxu0 0.0
    %432 = vmatprep.subr.mxu0 0.0
    %433 = vmatpush1.xpose.msra.mxu0 0.0
    %434 = vmatprep.subr.mxu0 0.0
    %435 = vmatpush1.xpose.msra.mxu0 0.0
    %436 = vmatprep.subr.mxu0 0.0
    %437 = vmatpush1.xpose.msra.mxu0 0.0
    %438 = vmatprep.subr.mxu0 0.0
    %439 = vmatpush1.xpose.msra.mxu0 0.0
    %440 = vmatprep.subr.mxu0 0.0
    %441 = vmatpush1.xpose.msra.mxu0 0.0
    %442 = vmatprep.subr.mxu0 0.0
    %443 = vmatpush1.xpose.msra.mxu0 0.0
    %444 = vmatprep.subr.mxu0 0.0
    %445 = vmatpush1.xpose.msra.mxu0 0.0
    %446 = vmatprep.subr.mxu0 0.0
    %447 = vmatpush1.xpose.msra.mxu0 0.0
    %448 = vmatprep.subr.mxu0 0.0
    %449 = vmatpush1.xpose.msra.mxu0 0.0
    %450 = vmatprep.subr.mxu0 0.0
    %451 = vmatpush1.xpose.msra.mxu0 0.0
    %452 = vmatprep.subr.mxu0 0.0
    %453 = vmatpush1.xpose.msra.mxu0 0.0
    %454 = vmatprep.subr.mxu0 0.0
    %455 = vmatpush1.xpose.msra.mxu0 0.0
    %456 = vmatprep.subr.mxu0 0.0
    %457 = vmatpush1.xpose.msra.mxu0 0.0
    %458 = vmatprep.subr.mxu0 0.0
    %459 = vmatpush1.xpose.msra.mxu0 0.0
    %460 = vmatprep.subr.mxu0 0.0
    %461 = vmatpush1.xpose.msra.mxu0 0.0
    %462 = vmatprep.subr.mxu0 0.0
    %463 = vmatpush1.xpose.msra.mxu0 0.0
    %464 = vmatprep.subr.mxu0 0.0
    %465 = vmatpush1.xpose.msra.mxu0 0.0
    %466 = vmatprep.mubr.f32.mxu0 0.0
    %467 = vmatmul.mubr.f32.gmra.mrb[0].mxu0 %v391
    %v468 = vpop.f32.mrb[0].mxu0
    %v469 = vadd.f32 %v67, %v468
    %v470 = vpop.f32.mrb[0].mxu0
    %471 = vmatprep.mubr.f32.mxu0 0.0
    %472 = vmatmul.mubr.f32.gmra.mrb[0].mxu0 %v394
    %v473 = vpop.f32.mrb[0].mxu0
    %v474 = vadd.f32 %v68, %v473
    %v475 = vpop.f32.mrb[0].mxu0
    %476 = vdwg.mxu0
    %vm477 = vcmask 130048
    %v478 = vsel %vm477, %v469, -inf
    %479 = vmax.xlane.f32.xlu0 %v478
    %v480 = vpop.xlane.xlu0 %479
    %v481 = vsel %vm477, %v474, -inf
    %482 = vmax.xlane.f32.xlu0 %v481
    %v483 = vpop.xlane.xlu0 %482
    %v484 = vsub.f32 %v469, %v480
    %v485 = vsub.f32 %v474, %v483
    %v486 = vmul.f32 %v484, 1.442695
    %v487 = vpow.pop %v486
    %v488 = vmul.f32 %v485, 1.442695
    %v489 = vpow.pop %v488
    %v491 = vsel %vm477, %v487, 0
    %v494 = vsel %vm477, %v489, 0
    %496 = vmatprep.subr.mxu0 0.0
    %497 = vmatpush1.msra.mxu0 %v379
    %498 = vmatprep.subr.mxu0 0.0
    %499 = vmatpush1.msra.mxu0 %v384
    %500 = vmatprep.subr.mxu0 0.0
    %501 = vmatpush1.msra.mxu0 0.0
    %502 = vmatprep.subr.mxu0 0.0
    %503 = vmatpush1.msra.mxu0 0.0
    %504 = vmatprep.subr.mxu0 0.0
    %505 = vmatpush1.msra.mxu0 0.0
    %506 = vmatprep.subr.mxu0 0.0
    %507 = vmatpush1.msra.mxu0 0.0
    %508 = vmatprep.subr.mxu0 0.0
    %509 = vmatpush1.msra.mxu0 0.0
    %510 = vmatprep.subr.mxu0 0.0
    %511 = vmatpush1.msra.mxu0 0.0
    %512 = vmatprep.subr.mxu0 0.0
    %513 = vmatpush1.msra.mxu0 0.0
    %514 = vmatprep.subr.mxu0 0.0
    %515 = vmatpush1.msra.mxu0 0.0
    %516 = vmatprep.subr.mxu0 0.0
    %517 = vmatpush1.msra.mxu0 0.0
    %518 = vmatprep.subr.mxu0 0.0
    %519 = vmatpush1.msra.mxu0 0.0
    %520 = vmatprep.subr.mxu0 0.0
    %521 = vmatpush1.msra.mxu0 0.0
    %522 = vmatprep.subr.mxu0 0.0
    %523 = vmatpush1.msra.mxu0 0.0
    %524 = vmatprep.subr.mxu0 0.0
    %525 = vmatpush1.msra.mxu0 0.0
    %526 = vmatprep.subr.mxu0 0.0
    %527 = vmatpush1.msra.mxu0 0.0
    %528 = vmatprep.subr.mxu0 0.0
    %529 = vmatpush1.msra.mxu0 0.0
    %530 = vmatprep.subr.mxu0 0.0
    %531 = vmatpush1.msra.mxu0 0.0
    %532 = vmatprep.subr.mxu0 0.0
    %533 = vmatpush1.msra.mxu0 0.0
    %534 = vmatprep.subr.mxu0 0.0
    %535 = vmatpush1.msra.mxu0 0.0
    %536 = vmatprep.subr.mxu0 0.0
    %537 = vmatpush1.msra.mxu0 0.0
    %538 = vmatprep.subr.mxu0 0.0
    %539 = vmatpush1.msra.mxu0 0.0
    %540 = vmatprep.subr.mxu0 0.0
    %541 = vmatpush1.msra.mxu0 0.0
    %542 = vmatprep.subr.mxu0 0.0
    %543 = vmatpush1.msra.mxu0 0.0
    %544 = vmatprep.subr.mxu0 0.0
    %545 = vmatpush1.msra.mxu0 0.0
    %546 = vmatprep.subr.mxu0 0.0
    %547 = vmatpush1.msra.mxu0 0.0
    %548 = vmatprep.subr.mxu0 0.0
    %549 = vmatpush1.msra.mxu0 0.0
    %550 = vmatprep.subr.mxu0 0.0
    %551 = vmatpush1.msra.mxu0 0.0
    %552 = vmatprep.subr.mxu0 0.0
    %553 = vmatpush1.msra.mxu0 0.0
    %554 = vmatprep.subr.mxu0 0.0
    %555 = vmatpush1.msra.mxu0 0.0
    %556 = vmatprep.subr.mxu0 0.0
    %557 = vmatpush1.msra.mxu0 0.0
    %558 = vmatprep.subr.mxu0 0.0
    %559 = vmatpush1.msra.mxu0 0.0
    %560 = vmatprep.mubr.f32.mxu0 0.0
    %561 = vmatmul.mubr.f32.gmra.mrb[0].mxu0 %v491
    %v562 = vpop.f32.mrb[0].mxu0
    %v563 = vadd.f32 0.0, %v562
    %v564 = vpop.f32.mrb[0].mxu0
    %565 = vmatprep.mubr.f32.mxu0 0.0
    %566 = vmatmul.mubr.f32.gmra.mrb[0].mxu0 %v494
    %v567 = vpop.f32.mrb[0].mxu0
    %v568 = vadd.f32 0.0, %v567
    %v569 = vpop.f32.mrb[0].mxu0
    %570 = vdwg.mxu0
    %v571 = vsel %vm477, %v487, 0.0
    %572 = vadd.xlane.f32.xlu0 %v571
    %v573 = vpop.xlane.xlu0 %572
    %v574 = vsel %vm477, %v489, 0.0
    %575 = vadd.xlane.f32.xlu0 %v574
    %v576 = vpop.xlane.xlu0 %575
    %v577 = vrcp.pop %v573
    %v578 = vrcp.pop %v576
    %v579 = vmul.f32 %v563, %v577
    %v580 = vmul.f32 %v568, %v578
    %v581 = vld [vmem:[%s9] sm:$0xff]
    %s582 = scalar_lea.vmem %s3, 32
    %v583 = vld [vmem:[%s582] sm:$0xff]
    %v584 = vld [vmem:[%s582 + $0x8] sm:$0xff]
    %v585 = vld [vmem:[%s582 + $0x10] sm:$0xff]
    %v586 = vld [vmem:[%s582 + $0x18] sm:$0xff]
    %s587 = scalar_lea.vmem %s6, 1
    %v588 = vld [vmem:[%s587] sm:$0x1]
    %v590 = vlaneseq
    %v591 = vshrl.u32 %v590, 7
    %v592 = vsub.s32 0, %v591
    %v593 = vrot.slane %v588, %v592
    %595 = vmatprep.subr.mxu0 0.0
    %596 = vmatpush1.msra.mxu0 %v583
    %597 = vmatprep.subr.mxu0 0.0
    %598 = vmatpush1.msra.mxu0 %v584
    %599 = vmatprep.subr.mxu0 0.0
    %600 = vmatpush1.msra.mxu0 %v585
    %601 = vmatprep.subr.mxu0 0.0
    %602 = vmatpush1.msra.mxu0 %v586
    %603 = vmatprep.subr.mxu0 0.0
    %604 = vmatpush1.msra.mxu0 0.0
    %605 = vmatprep.subr.mxu0 0.0
    %606 = vmatpush1.msra.mxu0 0.0
    %607 = vmatprep.subr.mxu0 0.0
    %608 = vmatpush1.msra.mxu0 0.0
    %609 = vmatprep.subr.mxu0 0.0
    %610 = vmatpush1.msra.mxu0 0.0
    %611 = vmatprep.subr.mxu0 0.0
    %612 = vmatpush1.msra.mxu0 0.0
    %613 = vmatprep.subr.mxu0 0.0
    %614 = vmatpush1.msra.mxu0 0.0
    %615 = vmatprep.subr.mxu0 0.0
    %616 = vmatpush1.msra.mxu0 0.0
    %617 = vmatprep.subr.mxu0 0.0
    %618 = vmatpush1.msra.mxu0 0.0
    %619 = vmatprep.subr.mxu0 0.0
    %620 = vmatpush1.msra.mxu0 0.0
    %621 = vmatprep.subr.mxu0 0.0
    %622 = vmatpush1.msra.mxu0 0.0
    %623 = vmatprep.subr.mxu0 0.0
    %624 = vmatpush1.msra.mxu0 0.0
    %625 = vmatprep.subr.mxu0 0.0
    %626 = vmatpush1.msra.mxu0 0.0
    %627 = vmatprep.subr.mxu0 0.0
    %628 = vmatpush1.msra.mxu0 0.0
    %629 = vmatprep.subr.mxu0 0.0
    %630 = vmatpush1.msra.mxu0 0.0
    %631 = vmatprep.subr.mxu0 0.0
    %632 = vmatpush1.msra.mxu0 0.0
    %633 = vmatprep.subr.mxu0 0.0
    %634 = vmatpush1.msra.mxu0 0.0
    %635 = vmatprep.subr.mxu0 0.0
    %636 = vmatpush1.msra.mxu0 0.0
    %637 = vmatprep.subr.mxu0 0.0
    %638 = vmatpush1.msra.mxu0 0.0
    %639 = vmatprep.subr.mxu0 0.0
    %640 = vmatpush1.msra.mxu0 0.0
    %641 = vmatprep.subr.mxu0 0.0
    %642 = vmatpush1.msra.mxu0 0.0
    %643 = vmatprep.subr.mxu0 0.0
    %644 = vmatpush1.msra.mxu0 0.0
    %645 = vmatprep.subr.mxu0 0.0
    %646 = vmatpush1.msra.mxu0 0.0
    %647 = vmatprep.subr.mxu0 0.0
    %648 = vmatpush1.msra.mxu0 0.0
    %649 = vmatprep.subr.mxu0 0.0
    %650 = vmatpush1.msra.mxu0 0.0
    %651 = vmatprep.subr.mxu0 0.0
    %652 = vmatpush1.msra.mxu0 0.0
    %653 = vmatprep.subr.mxu0 0.0
    %654 = vmatpush1.msra.mxu0 0.0
    %655 = vmatprep.subr.mxu0 0.0
    %656 = vmatpush1.msra.mxu0 0.0
    %657 = vmatprep.subr.mxu0 0.0
    %658 = vmatpush1.msra.mxu0 0.0
    %659 = vmatprep.mubr.f32.mxu0 0.0
    %660 = vmatmul.mubr.f32.gmra.mrb[0].mxu0 %v129
    %v661 = vpop.f32.mrb[0].mxu0
    %v662 = vadd.f32 %v593, %v661
    %v663 = vpop.f32.mrb[0].mxu0
    %664 = vmatprep.mubr.f32.mxu0 0.0
    %665 = vmatmul.mubr.f32.gmra.mrb[0].mxu0 %v132
    %v666 = vpop.f32.mrb[0].mxu0
    %v667 = vadd.f32 %v593, %v666
    %v668 = vpop.f32.mrb[0].mxu0
    %669 = vdwg.mxu0
    %s670 = scalar_lea.vmem %s4, 32
    %v671 = vld [vmem:[%s670] sm:$0xff]
    %v672 = vld [vmem:[%s670 + $0x8] sm:$0xff]
    %v673 = vld [vmem:[%s670 + $0x10] sm:$0xff]
    %v674 = vld [vmem:[%s670 + $0x18] sm:$0xff]
    %s675 = scalar_lea.vmem %s7, 1
    %v676 = vld [vmem:[%s675] sm:$0x1]
    %v678 = vlaneseq
    %v679 = vshrl.u32 %v678, 7
    %v680 = vsub.s32 0, %v679
    %v681 = vrot.slane %v676, %v680
    %683 = vmatprep.subr.mxu0 0.0
    %684 = vmatpush1.msra.mxu0 %v671
    %685 = vmatprep.subr.mxu0 0.0
    %686 = vmatpush1.msra.mxu0 %v672
    %687 = vmatprep.subr.mxu0 0.0
    %688 = vmatpush1.msra.mxu0 %v673
    %689 = vmatprep.subr.mxu0 0.0
    %690 = vmatpush1.msra.mxu0 %v674
    %691 = vmatprep.subr.mxu0 0.0
    %692 = vmatpush1.msra.mxu0 0.0
    %693 = vmatprep.subr.mxu0 0.0
    %694 = vmatpush1.msra.mxu0 0.0
    %695 = vmatprep.subr.mxu0 0.0
    %696 = vmatpush1.msra.mxu0 0.0
    %697 = vmatprep.subr.mxu0 0.0
    %698 = vmatpush1.msra.mxu0 0.0
    %699 = vmatprep.subr.mxu0 0.0
    %700 = vmatpush1.msra.mxu0 0.0
    %701 = vmatprep.subr.mxu0 0.0
    %702 = vmatpush1.msra.mxu0 0.0
    %703 = vmatprep.subr.mxu0 0.0
    %704 = vmatpush1.msra.mxu0 0.0
    %705 = vmatprep.subr.mxu0 0.0
    %706 = vmatpush1.msra.mxu0 0.0
    %707 = vmatprep.subr.mxu0 0.0
    %708 = vmatpush1.msra.mxu0 0.0
    %709 = vmatprep.subr.mxu0 0.0
    %710 = vmatpush1.msra.mxu0 0.0
    %711 = vmatprep.subr.mxu0 0.0
    %712 = vmatpush1.msra.mxu0 0.0
    %713 = vmatprep.subr.mxu0 0.0
    %714 = vmatpush1.msra.mxu0 0.0
    %715 = vmatprep.subr.mxu0 0.0
    %716 = vmatpush1.msra.mxu0 0.0
    %717 = vmatprep.subr.mxu0 0.0
    %718 = vmatpush1.msra.mxu0 0.0
    %719 = vmatprep.subr.mxu0 0.0
    %720 = vmatpush1.msra.mxu0 0.0
    %721 = vmatprep.subr.mxu0 0.0
    %722 = vmatpush1.msra.mxu0 0.0
    %723 = vmatprep.subr.mxu0 0.0
    %724 = vmatpush1.msra.mxu0 0.0
    %725 = vmatprep.subr.mxu0 0.0
    %726 = vmatpush1.msra.mxu0 0.0
    %727 = vmatprep.subr.mxu0 0.0
    %728 = vmatpush1.msra.mxu0 0.0
    %729 = vmatprep.subr.mxu0 0.0
    %730 = vmatpush1.msra.mxu0 0.0
    %731 = vmatprep.subr.mxu0 0.0
    %732 = vmatpush1.msra.mxu0 0.0
    %733 = vmatprep.subr.mxu0 0.0
    %734 = vmatpush1.msra.mxu0 0.0
    %735 = vmatprep.subr.mxu0 0.0
    %736 = vmatpush1.msra.mxu0 0.0
    %737 = vmatprep.subr.mxu0 0.0
    %738 = vmatpush1.msra.mxu0 0.0
    %739 = vmatprep.subr.mxu0 0.0
    %740 = vmatpush1.msra.mxu0 0.0
    %741 = vmatprep.subr.mxu0 0.0
    %742 = vmatpush1.msra.mxu0 0.0
    %743 = vmatprep.subr.mxu0 0.0
    %744 = vmatpush1.msra.mxu0 0.0
    %745 = vmatprep.subr.mxu0 0.0
    %746 = vmatpush1.msra.mxu0 0.0
    %747 = vmatprep.mubr.f32.mxu0 0.0
    %748 = vmatmul.mubr.f32.gmra.mrb[0].mxu0 %v129
    %v749 = vpop.f32.mrb[0].mxu0
    %v750 = vadd.f32 %v681, %v749
    %v751 = vpop.f32.mrb[0].mxu0
    %752 = vmatprep.mubr.f32.mxu0 0.0
    %753 = vmatmul.mubr.f32.gmra.mrb[0].mxu0 %v132
    %v754 = vpop.f32.mrb[0].mxu0
    %v755 = vadd.f32 %v681, %v754
    %v756 = vpop.f32.mrb[0].mxu0
    %757 = vdwg.mxu0
    %s758 = scalar_lea.vmem %s5, 32
    %v759 = vld [vmem:[%s758] sm:$0xff]
    %v760 = vld [vmem:[%s758 + $0x8] sm:$0xff]
    %v761 = vld [vmem:[%s758 + $0x10] sm:$0xff]
    %v762 = vld [vmem:[%s758 + $0x18] sm:$0xff]
    %s763 = scalar_lea.vmem %s8, 1
    %v764 = vld [vmem:[%s763] sm:$0x1]
    %v766 = vlaneseq
    %v767 = vshrl.u32 %v766, 7
    %v768 = vsub.s32 0, %v767
    %v769 = vrot.slane %v764, %v768
    %771 = vmatprep.subr.mxu0 0.0
    %772 = vmatpush1.msra.mxu0 %v759
    %773 = vmatprep.subr.mxu0 0.0
    %774 = vmatpush1.msra.mxu0 %v760
    %775 = vmatprep.subr.mxu0 0.0
    %776 = vmatpush1.msra.mxu0 %v761
    %777 = vmatprep.subr.mxu0 0.0
    %778 = vmatpush1.msra.mxu0 %v762
    %779 = vmatprep.subr.mxu0 0.0
    %780 = vmatpush1.msra.mxu0 0.0
    %781 = vmatprep.subr.mxu0 0.0
    %782 = vmatpush1.msra.mxu0 0.0
    %783 = vmatprep.subr.mxu0 0.0
    %784 = vmatpush1.msra.mxu0 0.0
    %785 = vmatprep.subr.mxu0 0.0
    %786 = vmatpush1.msra.mxu0 0.0
    %787 = vmatprep.subr.mxu0 0.0
    %788 = vmatpush1.msra.mxu0 0.0
    %789 = vmatprep.subr.mxu0 0.0
    %790 = vmatpush1.msra.mxu0 0.0
    %791 = vmatprep.subr.mxu0 0.0
    %792 = vmatpush1.msra.mxu0 0.0
    %793 = vmatprep.subr.mxu0 0.0
    %794 = vmatpush1.msra.mxu0 0.0
    %795 = vmatprep.subr.mxu0 0.0
    %796 = vmatpush1.msra.mxu0 0.0
    %797 = vmatprep.subr.mxu0 0.0
    %798 = vmatpush1.msra.mxu0 0.0
    %799 = vmatprep.subr.mxu0 0.0
    %800 = vmatpush1.msra.mxu0 0.0
    %801 = vmatprep.subr.mxu0 0.0
    %802 = vmatpush1.msra.mxu0 0.0
    %803 = vmatprep.subr.mxu0 0.0
    %804 = vmatpush1.msra.mxu0 0.0
    %805 = vmatprep.subr.mxu0 0.0
    %806 = vmatpush1.msra.mxu0 0.0
    %807 = vmatprep.subr.mxu0 0.0
    %808 = vmatpush1.msra.mxu0 0.0
    %809 = vmatprep.subr.mxu0 0.0
    %810 = vmatpush1.msra.mxu0 0.0
    %811 = vmatprep.subr.mxu0 0.0
    %812 = vmatpush1.msra.mxu0 0.0
    %813 = vmatprep.subr.mxu0 0.0
    %814 = vmatpush1.msra.mxu0 0.0
    %815 = vmatprep.subr.mxu0 0.0
    %816 = vmatpush1.msra.mxu0 0.0
    %817 = vmatprep.subr.mxu0 0.0
    %818 = vmatpush1.msra.mxu0 0.0
    %819 = vmatprep.subr.mxu0 0.0
    %820 = vmatpush1.msra.mxu0 0.0
    %821 = vmatprep.subr.mxu0 0.0
    %822 = vmatpush1.msra.mxu0 0.0
    %823 = vmatprep.subr.mxu0 0.0
    %824 = vmatpush1.msra.mxu0 0.0
    %825 = vmatprep.subr.mxu0 0.0
    %826 = vmatpush1.msra.mxu0 0.0
    %827 = vmatprep.subr.mxu0 0.0
    %828 = vmatpush1.msra.mxu0 0.0
    %829 = vmatprep.subr.mxu0 0.0
    %830 = vmatpush1.msra.mxu0 0.0
    %831 = vmatprep.subr.mxu0 0.0
    %832 = vmatpush1.msra.mxu0 0.0
    %833 = vmatprep.subr.mxu0 0.0
    %834 = vmatpush1.msra.mxu0 0.0
    %835 = vmatprep.mubr.f32.mxu0 0.0
    %836 = vmatmul.mubr.f32.gmra.mrb[0].mxu0 %v307
    %v837 = vpop.f32.mrb[0].mxu0
    %v838 = vadd.f32 %v769, %v837
    %v839 = vpop.f32.mrb[0].mxu0
    %840 = vmatprep.mubr.f32.mxu0 0.0
    %841 = vmatmul.mubr.f32.gmra.mrb[0].mxu0 %v310
    %v842 = vpop.f32.mrb[0].mxu0
    %v843 = vadd.f32 %v769, %v842
    %v844 = vpop.f32.mrb[0].mxu0
    %845 = vdwg.mxu0
    %v846 = vmul.f32 %v662, 0.35355338
    %v847 = vmul.f32 %v667, 0.35355338
    %v849 = vsel %vm389, %v846, 0
    %v852 = vsel %vm389, %v847, 0
    %v855 = vsel %vm389, %v750, 0
    %v858 = vsel %vm389, %v755, 0
    %860 = vmatprep.subr.mxu0 0.0
    %861 = vmatpush1.xpose.msra.mxu0 %v855
    %862 = vmatprep.subr.mxu0 0.0
    %863 = vmatpush1.xpose.msra.mxu0 %v858
    %864 = vmatprep.subr.mxu0 0.0
    %865 = vmatpush1.xpose.msra.mxu0 0.0
    %866 = vmatprep.subr.mxu0 0.0
    %867 = vmatpush1.xpose.msra.mxu0 0.0
    %868 = vmatprep.subr.mxu0 0.0
    %869 = vmatpush1.xpose.msra.mxu0 0.0
    %870 = vmatprep.subr.mxu0 0.0
    %871 = vmatpush1.xpose.msra.mxu0 0.0
    %872 = vmatprep.subr.mxu0 0.0
    %873 = vmatpush1.xpose.msra.mxu0 0.0
    %874 = vmatprep.subr.mxu0 0.0
    %875 = vmatpush1.xpose.msra.mxu0 0.0
    %876 = vmatprep.subr.mxu0 0.0
    %877 = vmatpush1.xpose.msra.mxu0 0.0
    %878 = vmatprep.subr.mxu0 0.0
    %879 = vmatpush1.xpose.msra.mxu0 0.0
    %880 = vmatprep.subr.mxu0 0.0
    %881 = vmatpush1.xpose.msra.mxu0 0.0
    %882 = vmatprep.subr.mxu0 0.0
    %883 = vmatpush1.xpose.msra.mxu0 0.0
    %884 = vmatprep.subr.mxu0 0.0
    %885 = vmatpush1.xpose.msra.mxu0 0.0
    %886 = vmatprep.subr.mxu0 0.0
    %887 = vmatpush1.xpose.msra.mxu0 0.0
    %888 = vmatprep.subr.mxu0 0.0
    %889 = vmatpush1.xpose.msra.mxu0 0.0
    %890 = vmatprep.subr.mxu0 0.0
    %891 = vmatpush1.xpose.msra.mxu0 0.0
    %892 = vmatprep.subr.mxu0 0.0
    %893 = vmatpush1.xpose.msra.mxu0 0.0
    %894 = vmatprep.subr.mxu0 0.0
    %895 = vmatpush1.xpose.msra.mxu0 0.0
    %896 = vmatprep.subr.mxu0 0.0
    %897 = vmatpush1.xpose.msra.mxu0 0.0
    %898 = vmatprep.subr.mxu0 0.0
    %899 = vmatpush1.xpose.msra.mxu0 0.0
    %900 = vmatprep.subr.mxu0 0.0
    %901 = vmatpush1.xpose.msra.mxu0 0.0
    %902 = vmatprep.subr.mxu0 0.0
    %903 = vmatpush1.xpose.msra.mxu0 0.0
    %904 = vmatprep.subr.mxu0 0.0
    %905 = vmatpush1.xpose.msra.mxu0 0.0
    %906 = vmatprep.subr.mxu0 0.0
    %907 = vmatpush1.xpose.msra.mxu0 0.0
    %908 = vmatprep.subr.mxu0 0.0
    %909 = vmatpush1.xpose.msra.mxu0 0.0
    %910 = vmatprep.subr.mxu0 0.0
    %911 = vmatpush1.xpose.msra.mxu0 0.0
    %912 = vmatprep.subr.mxu0 0.0
    %913 = vmatpush1.xpose.msra.mxu0 0.0
    %914 = vmatprep.subr.mxu0 0.0
    %915 = vmatpush1.xpose.msra.mxu0 0.0
    %916 = vmatprep.subr.mxu0 0.0
    %917 = vmatpush1.xpose.msra.mxu0 0.0
    %918 = vmatprep.subr.mxu0 0.0
    %919 = vmatpush1.xpose.msra.mxu0 0.0
    %920 = vmatprep.subr.mxu0 0.0
    %921 = vmatpush1.xpose.msra.mxu0 0.0
    %922 = vmatprep.subr.mxu0 0.0
    %923 = vmatpush1.xpose.msra.mxu0 0.0
    %924 = vmatprep.mubr.f32.mxu0 0.0
    %925 = vmatmul.mubr.f32.gmra.mrb[0].mxu0 %v849
    %v926 = vpop.f32.mrb[0].mxu0
    %v927 = vadd.f32 %v67, %v926
    %v928 = vpop.f32.mrb[0].mxu0
    %929 = vmatprep.mubr.f32.mxu0 0.0
    %930 = vmatmul.mubr.f32.gmra.mrb[0].mxu0 %v852
    %v931 = vpop.f32.mrb[0].mxu0
    %v932 = vadd.f32 %v68, %v931
    %v933 = vpop.f32.mrb[0].mxu0
    %934 = vdwg.mxu0
    %v935 = vsel %vm477, %v927, -inf
    %936 = vmax.xlane.f32.xlu0 %v935
    %v937 = vpop.xlane.xlu0 %936
    %v938 = vsel %vm477, %v932, -inf
    %939 = vmax.xlane.f32.xlu0 %v938
    %v940 = vpop.xlane.xlu0 %939
    %v941 = vsub.f32 %v927, %v937
    %v942 = vsub.f32 %v932, %v940
    %v943 = vmul.f32 %v941, 1.442695
    %v944 = vpow.pop %v943
    %v945 = vmul.f32 %v942, 1.442695
    %v946 = vpow.pop %v945
    %v948 = vsel %vm477, %v944, 0
    %v951 = vsel %vm477, %v946, 0
    %953 = vmatprep.subr.mxu0 0.0
    %954 = vmatpush1.msra.mxu0 %v838
    %955 = vmatprep.subr.mxu0 0.0
    %956 = vmatpush1.msra.mxu0 %v843
    %957 = vmatprep.subr.mxu0 0.0
    %958 = vmatpush1.msra.mxu0 0.0
    %959 = vmatprep.subr.mxu0 0.0
    %960 = vmatpush1.msra.mxu0 0.0
    %961 = vmatprep.subr.mxu0 0.0
    %962 = vmatpush1.msra.mxu0 0.0
    %963 = vmatprep.subr.mxu0 0.0
    %964 = vmatpush1.msra.mxu0 0.0
    %965 = vmatprep.subr.mxu0 0.0
    %966 = vmatpush1.msra.mxu0 0.0
    %967 = vmatprep.subr.mxu0 0.0
    %968 = vmatpush1.msra.mxu0 0.0
    %969 = vmatprep.subr.mxu0 0.0
    %970 = vmatpush1.msra.mxu0 0.0
    %971 = vmatprep.subr.mxu0 0.0
    %972 = vmatpush1.msra.mxu0 0.0
    %973 = vmatprep.subr.mxu0 0.0
    %974 = vmatpush1.msra.mxu0 0.0
    %975 = vmatprep.subr.mxu0 0.0
    %976 = vmatpush1.msra.mxu0 0.0
    %977 = vmatprep.subr.mxu0 0.0
    %978 = vmatpush1.msra.mxu0 0.0
    %979 = vmatprep.subr.mxu0 0.0
    %980 = vmatpush1.msra.mxu0 0.0
    %981 = vmatprep.subr.mxu0 0.0
    %982 = vmatpush1.msra.mxu0 0.0
    %983 = vmatprep.subr.mxu0 0.0
    %984 = vmatpush1.msra.mxu0 0.0
    %985 = vmatprep.subr.mxu0 0.0
    %986 = vmatpush1.msra.mxu0 0.0
    %987 = vmatprep.subr.mxu0 0.0
    %988 = vmatpush1.msra.mxu0 0.0
    %989 = vmatprep.subr.mxu0 0.0
    %990 = vmatpush1.msra.mxu0 0.0
    %991 = vmatprep.subr.mxu0 0.0
    %992 = vmatpush1.msra.mxu0 0.0
    %993 = vmatprep.subr.mxu0 0.0
    %994 = vmatpush1.msra.mxu0 0.0
    %995 = vmatprep.subr.mxu0 0.0
    %996 = vmatpush1.msra.mxu0 0.0
    %997 = vmatprep.subr.mxu0 0.0
    %998 = vmatpush1.msra.mxu0 0.0
    %999 = vmatprep.subr.mxu0 0.0
    %1000 = vmatpush1.msra.mxu0 0.0
    %1001 = vmatprep.subr.mxu0 0.0
    %1002 = vmatpush1.msra.mxu0 0.0
    %1003 = vmatprep.subr.mxu0 0.0
    %1004 = vmatpush1.msra.mxu0 0.0
    %1005 = vmatprep.subr.mxu0 0.0
    %1006 = vmatpush1.msra.mxu0 0.0
    %1007 = vmatprep.subr.mxu0 0.0
    %1008 = vmatpush1.msra.mxu0 0.0
    %1009 = vmatprep.subr.mxu0 0.0
    %1010 = vmatpush1.msra.mxu0 0.0
    %1011 = vmatprep.subr.mxu0 0.0
    %1012 = vmatpush1.msra.mxu0 0.0
    %1013 = vmatprep.subr.mxu0 0.0
    %1014 = vmatpush1.msra.mxu0 0.0
    %1015 = vmatprep.subr.mxu0 0.0
    %1016 = vmatpush1.msra.mxu0 0.0
    %1017 = vmatprep.mubr.f32.mxu0 0.0
    %1018 = vmatmul.mubr.f32.gmra.mrb[0].mxu0 %v948
    %v1019 = vpop.f32.mrb[0].mxu0
    %v1020 = vadd.f32 0.0, %v1019
    %v1021 = vpop.f32.mrb[0].mxu0
    %1022 = vmatprep.mubr.f32.mxu0 0.0
    %1023 = vmatmul.mubr.f32.gmra.mrb[0].mxu0 %v951
    %v1024 = vpop.f32.mrb[0].mxu0
    %v1025 = vadd.f32 0.0, %v1024
    %v1026 = vpop.f32.mrb[0].mxu0
    %1027 = vdwg.mxu0
    %v1028 = vsel %vm477, %v944, 0.0
    %1029 = vadd.xlane.f32.xlu0 %v1028
    %v1030 = vpop.xlane.xlu0 %1029
    %v1031 = vsel %vm477, %v946, 0.0
    %1032 = vadd.xlane.f32.xlu0 %v1031
    %v1033 = vpop.xlane.xlu0 %1032
    %v1034 = vrcp.pop %v1030
    %v1035 = vrcp.pop %v1033
    %v1036 = vmul.f32 %v1020, %v1034
    %v1037 = vmul.f32 %v1025, %v1035
    %s1038 = scalar_lea.vmem %s9, 8
    %v1039 = vld [vmem:[%s1038] sm:$0xff]
    %v1041 = vsel %vm389, %v1036, 0
    %v1044 = vsel %vm389, %v1037, 0
    %1046 = vmatprep.subr.mxu0 0.0
    %1047 = vmatpush1.msra.mxu0 %v1039
    %1048 = vmatprep.subr.mxu0 0.0
    %1049 = vmatpush1.msra.mxu0 0.0
    %1050 = vmatprep.subr.mxu0 0.0
    %1051 = vmatpush1.msra.mxu0 0.0
    %1052 = vmatprep.subr.mxu0 0.0
    %1053 = vmatpush1.msra.mxu0 0.0
    %1054 = vmatprep.subr.mxu0 0.0
    %1055 = vmatpush1.msra.mxu0 0.0
    %1056 = vmatprep.subr.mxu0 0.0
    %1057 = vmatpush1.msra.mxu0 0.0
    %1058 = vmatprep.subr.mxu0 0.0
    %1059 = vmatpush1.msra.mxu0 0.0
    %1060 = vmatprep.subr.mxu0 0.0
    %1061 = vmatpush1.msra.mxu0 0.0
    %1062 = vmatprep.subr.mxu0 0.0
    %1063 = vmatpush1.msra.mxu0 0.0
    %1064 = vmatprep.subr.mxu0 0.0
    %1065 = vmatpush1.msra.mxu0 0.0
    %1066 = vmatprep.subr.mxu0 0.0
    %1067 = vmatpush1.msra.mxu0 0.0
    %1068 = vmatprep.subr.mxu0 0.0
    %1069 = vmatpush1.msra.mxu0 0.0
    %1070 = vmatprep.subr.mxu0 0.0
    %1071 = vmatpush1.msra.mxu0 0.0
    %1072 = vmatprep.subr.mxu0 0.0
    %1073 = vmatpush1.msra.mxu0 0.0
    %1074 = vmatprep.subr.mxu0 0.0
    %1075 = vmatpush1.msra.mxu0 0.0
    %1076 = vmatprep.subr.mxu0 0.0
    %1077 = vmatpush1.msra.mxu0 0.0
    %1078 = vmatprep.subr.mxu0 0.0
    %1079 = vmatpush1.msra.mxu0 0.0
    %1080 = vmatprep.subr.mxu0 0.0
    %1081 = vmatpush1.msra.mxu0 0.0
    %1082 = vmatprep.subr.mxu0 0.0
    %1083 = vmatpush1.msra.mxu0 0.0
    %1084 = vmatprep.subr.mxu0 0.0
    %1085 = vmatpush1.msra.mxu0 0.0
    %1086 = vmatprep.subr.mxu0 0.0
    %1087 = vmatpush1.msra.mxu0 0.0
    %1088 = vmatprep.subr.mxu0 0.0
    %1089 = vmatpush1.msra.mxu0 0.0
    %1090 = vmatprep.subr.mxu0 0.0
    %1091 = vmatpush1.msra.mxu0 0.0
    %1092 = vmatprep.subr.mxu0 0.0
    %1093 = vmatpush1.msra.mxu0 0.0
    %1094 = vmatprep.subr.mxu0 0.0
    %1095 = vmatpush1.msra.mxu0 0.0
    %1096 = vmatprep.subr.mxu0 0.0
    %1097 = vmatpush1.msra.mxu0 0.0
    %1098 = vmatprep.subr.mxu0 0.0
    %1099 = vmatpush1.msra.mxu0 0.0
    %1100 = vmatprep.subr.mxu0 0.0
    %1101 = vmatpush1.msra.mxu0 0.0
    %1102 = vmatprep.subr.mxu0 0.0
    %1103 = vmatpush1.msra.mxu0 0.0
    %1104 = vmatprep.subr.mxu0 0.0
    %1105 = vmatpush1.msra.mxu0 0.0
    %1106 = vmatprep.subr.mxu0 0.0
    %1107 = vmatpush1.msra.mxu0 0.0
    %1108 = vmatprep.subr.mxu0 0.0
    %1109 = vmatpush1.msra.mxu0 0.0
    %1110 = vmatprep.mubr.f32.mxu0 0.0
    %1111 = vmatmul.mubr.f32.gmra.mrb[0].mxu0 %v1041
    %v1112 = vpop.f32.mrb[0].mxu0
    %v1113 = vadd.f32 0.0, %v1112
    %v1114 = vpop.f32.mrb[0].mxu0
    %1115 = vmatprep.mubr.f32.mxu0 0.0
    %1116 = vmatmul.mubr.f32.gmra.mrb[0].mxu0 %v1044
    %v1117 = vpop.f32.mrb[0].mxu0
    %v1118 = vadd.f32 0.0, %v1117
    %v1119 = vpop.f32.mrb[0].mxu0
    %1120 = vdwg.mxu0
    %v1122 = vsel %vm389, %v579, 0
    %v1125 = vsel %vm389, %v580, 0
    %1127 = vmatprep.subr.mxu0 0.0
    %1128 = vmatpush1.msra.mxu0 %v581
    %1129 = vmatprep.subr.mxu0 0.0
    %1130 = vmatpush1.msra.mxu0 0.0
    %1131 = vmatprep.subr.mxu0 0.0
    %1132 = vmatpush1.msra.mxu0 0.0
    %1133 = vmatprep.subr.mxu0 0.0
    %1134 = vmatpush1.msra.mxu0 0.0
    %1135 = vmatprep.subr.mxu0 0.0
    %1136 = vmatpush1.msra.mxu0 0.0
    %1137 = vmatprep.subr.mxu0 0.0
    %1138 = vmatpush1.msra.mxu0 0.0
    %1139 = vmatprep.subr.mxu0 0.0
    %1140 = vmatpush1.msra.mxu0 0.0
    %1141 = vmatprep.subr.mxu0 0.0
    %1142 = vmatpush1.msra.mxu0 0.0
    %1143 = vmatprep.subr.mxu0 0.0
    %1144 = vmatpush1.msra.mxu0 0.0
    %1145 = vmatprep.subr.mxu0 0.0
    %1146 = vmatpush1.msra.mxu0 0.0
    %1147 = vmatprep.subr.mxu0 0.0
    %1148 = vmatpush1.msra.mxu0 0.0
    %1149 = vmatprep.subr.mxu0 0.0
    %1150 = vmatpush1.msra.mxu0 0.0
    %1151 = vmatprep.subr.mxu0 0.0
    %1152 = vmatpush1.msra.mxu0 0.0
    %1153 = vmatprep.subr.mxu0 0.0
    %1154 = vmatpush1.msra.mxu0 0.0
    %1155 = vmatprep.subr.mxu0 0.0
    %1156 = vmatpush1.msra.mxu0 0.0
    %1157 = vmatprep.subr.mxu0 0.0
    %1158 = vmatpush1.msra.mxu0 0.0
    %1159 = vmatprep.subr.mxu0 0.0
    %1160 = vmatpush1.msra.mxu0 0.0
    %1161 = vmatprep.subr.mxu0 0.0
    %1162 = vmatpush1.msra.mxu0 0.0
    %1163 = vmatprep.subr.mxu0 0.0
    %1164 = vmatpush1.msra.mxu0 0.0
    %1165 = vmatprep.subr.mxu0 0.0
    %1166 = vmatpush1.msra.mxu0 0.0
    %1167 = vmatprep.subr.mxu0 0.0
    %1168 = vmatpush1.msra.mxu0 0.0
    %1169 = vmatprep.subr.mxu0 0.0
    %1170 = vmatpush1.msra.mxu0 0.0
    %1171 = vmatprep.subr.mxu0 0.0
    %1172 = vmatpush1.msra.mxu0 0.0
    %1173 = vmatprep.subr.mxu0 0.0
    %1174 = vmatpush1.msra.mxu0 0.0
    %1175 = vmatprep.subr.mxu0 0.0
    %1176 = vmatpush1.msra.mxu0 0.0
    %1177 = vmatprep.subr.mxu0 0.0
    %1178 = vmatpush1.msra.mxu0 0.0
    %1179 = vmatprep.subr.mxu0 0.0
    %1180 = vmatpush1.msra.mxu0 0.0
    %1181 = vmatprep.subr.mxu0 0.0
    %1182 = vmatpush1.msra.mxu0 0.0
    %1183 = vmatprep.subr.mxu0 0.0
    %1184 = vmatpush1.msra.mxu0 0.0
    %1185 = vmatprep.subr.mxu0 0.0
    %1186 = vmatpush1.msra.mxu0 0.0
    %1187 = vmatprep.subr.mxu0 0.0
    %1188 = vmatpush1.msra.mxu0 0.0
    %1189 = vmatprep.subr.mxu0 0.0
    %1190 = vmatpush1.msra.mxu0 0.0
    %1191 = vmatprep.mubr.f32.mxu0 0.0
    %1192 = vmatmul.mubr.f32.gmra.mrb[0].mxu0 %v1122
    %v1193 = vpop.f32.mrb[0].mxu0
    %v1194 = vadd.f32 %v1113, %v1193
    %v1195 = vpop.f32.mrb[0].mxu0
    %1196 = vmatprep.mubr.f32.mxu0 0.0
    %1197 = vmatmul.mubr.f32.gmra.mrb[0].mxu0 %v1125
    %v1198 = vpop.f32.mrb[0].mxu0
    %v1199 = vadd.f32 %v1118, %v1198
    %v1200 = vpop.f32.mrb[0].mxu0
    %1201 = vdwg.mxu0
    %s1202 = scalar_lea.vmem %s3, 64
    %v1203 = vld [vmem:[%s1202] sm:$0xff]
    %v1204 = vld [vmem:[%s1202 + $0x8] sm:$0xff]
    %v1205 = vld [vmem:[%s1202 + $0x10] sm:$0xff]
    %v1206 = vld [vmem:[%s1202 + $0x18] sm:$0xff]
    %s1207 = scalar_lea.vmem %s6, 2
    %v1208 = vld [vmem:[%s1207] sm:$0x1]
    %v1210 = vlaneseq
    %v1211 = vshrl.u32 %v1210, 7
    %v1212 = vsub.s32 0, %v1211
    %v1213 = vrot.slane %v1208, %v1212
    %1215 = vmatprep.subr.mxu0 0.0
    %1216 = vmatpush1.msra.mxu0 %v1203
    %1217 = vmatprep.subr.mxu0 0.0
    %1218 = vmatpush1.msra.mxu0 %v1204
    %1219 = vmatprep.subr.mxu0 0.0
    %1220 = vmatpush1.msra.mxu0 %v1205
    %1221 = vmatprep.subr.mxu0 0.0
    %1222 = vmatpush1.msra.mxu0 %v1206
    %1223 = vmatprep.subr.mxu0 0.0
    %1224 = vmatpush1.msra.mxu0 0.0
    %1225 = vmatprep.subr.mxu0 0.0
    %1226 = vmatpush1.msra.mxu0 0.0
    %1227 = vmatprep.subr.mxu0 0.0
    %1228 = vmatpush1.msra.mxu0 0.0
    %1229 = vmatprep.subr.mxu0 0.0
    %1230 = vmatpush1.msra.mxu0 0.0
    %1231 = vmatprep.subr.mxu0 0.0
    %1232 = vmatpush1.msra.mxu0 0.0
    %1233 = vmatprep.subr.mxu0 0.0
    %1234 = vmatpush1.msra.mxu0 0.0
    %1235 = vmatprep.subr.mxu0 0.0
    %1236 = vmatpush1.msra.mxu0 0.0
    %1237 = vmatprep.subr.mxu0 0.0
    %1238 = vmatpush1.msra.mxu0 0.0
    %1239 = vmatprep.subr.mxu0 0.0
    %1240 = vmatpush1.msra.mxu0 0.0
    %1241 = vmatprep.subr.mxu0 0.0
    %1242 = vmatpush1.msra.mxu0 0.0
    %1243 = vmatprep.subr.mxu0 0.0
    %1244 = vmatpush1.msra.mxu0 0.0
    %1245 = vmatprep.subr.mxu0 0.0
    %1246 = vmatpush1.msra.mxu0 0.0
    %1247 = vmatprep.subr.mxu0 0.0
    %1248 = vmatpush1.msra.mxu0 0.0
    %1249 = vmatprep.subr.mxu0 0.0
    %1250 = vmatpush1.msra.mxu0 0.0
    %1251 = vmatprep.subr.mxu0 0.0
    %1252 = vmatpush1.msra.mxu0 0.0
    %1253 = vmatprep.subr.mxu0 0.0
    %1254 = vmatpush1.msra.mxu0 0.0
    %1255 = vmatprep.subr.mxu0 0.0
    %1256 = vmatpush1.msra.mxu0 0.0
    %1257 = vmatprep.subr.mxu0 0.0
    %1258 = vmatpush1.msra.mxu0 0.0
    %1259 = vmatprep.subr.mxu0 0.0
    %1260 = vmatpush1.msra.mxu0 0.0
    %1261 = vmatprep.subr.mxu0 0.0
    %1262 = vmatpush1.msra.mxu0 0.0
    %1263 = vmatprep.subr.mxu0 0.0
    %1264 = vmatpush1.msra.mxu0 0.0
    %1265 = vmatprep.subr.mxu0 0.0
    %1266 = vmatpush1.msra.mxu0 0.0
    %1267 = vmatprep.subr.mxu0 0.0
    %1268 = vmatpush1.msra.mxu0 0.0
    %1269 = vmatprep.subr.mxu0 0.0
    %1270 = vmatpush1.msra.mxu0 0.0
    %1271 = vmatprep.subr.mxu0 0.0
    %1272 = vmatpush1.msra.mxu0 0.0
    %1273 = vmatprep.subr.mxu0 0.0
    %1274 = vmatpush1.msra.mxu0 0.0
    %1275 = vmatprep.subr.mxu0 0.0
    %1276 = vmatpush1.msra.mxu0 0.0
    %1277 = vmatprep.subr.mxu0 0.0
    %1278 = vmatpush1.msra.mxu0 0.0
    %1279 = vmatprep.mubr.f32.mxu0 0.0
    %1280 = vmatmul.mubr.f32.gmra.mrb[0].mxu0 %v129
    %v1281 = vpop.f32.mrb[0].mxu0
    %v1282 = vadd.f32 %v1213, %v1281
    %v1283 = vpop.f32.mrb[0].mxu0
    %1284 = vmatprep.mubr.f32.mxu0 0.0
    %1285 = vmatmul.mubr.f32.gmra.mrb[0].mxu0 %v132
    %v1286 = vpop.f32.mrb[0].mxu0
    %v1287 = vadd.f32 %v1213, %v1286
    %v1288 = vpop.f32.mrb[0].mxu0
    %1289 = vdwg.mxu0
    %s1290 = scalar_lea.vmem %s4, 64
    %v1291 = vld [vmem:[%s1290] sm:$0xff]
    %v1292 = vld [vmem:[%s1290 + $0x8] sm:$0xff]
    %v1293 = vld [vmem:[%s1290 + $0x10] sm:$0xff]
    %v1294 = vld [vmem:[%s1290 + $0x18] sm:$0xff]
    %s1295 = scalar_lea.vmem %s7, 2
    %v1296 = vld [vmem:[%s1295] sm:$0x1]
    %v1298 = vlaneseq
    %v1299 = vshrl.u32 %v1298, 7
    %v1300 = vsub.s32 0, %v1299
    %v1301 = vrot.slane %v1296, %v1300
    %1303 = vmatprep.subr.mxu0 0.0
    %1304 = vmatpush1.msra.mxu0 %v1291
    %1305 = vmatprep.subr.mxu0 0.0
    %1306 = vmatpush1.msra.mxu0 %v1292
    %1307 = vmatprep.subr.mxu0 0.0
    %1308 = vmatpush1.msra.mxu0 %v1293
    %1309 = vmatprep.subr.mxu0 0.0
    %1310 = vmatpush1.msra.mxu0 %v1294
    %1311 = vmatprep.subr.mxu0 0.0
    %1312 = vmatpush1.msra.mxu0 0.0
    %1313 = vmatprep.subr.mxu0 0.0
    %1314 = vmatpush1.msra.mxu0 0.0
    %1315 = vmatprep.subr.mxu0 0.0
    %1316 = vmatpush1.msra.mxu0 0.0
    %1317 = vmatprep.subr.mxu0 0.0
    %1318 = vmatpush1.msra.mxu0 0.0
    %1319 = vmatprep.subr.mxu0 0.0
    %1320 = vmatpush1.msra.mxu0 0.0
    %1321 = vmatprep.subr.mxu0 0.0
    %1322 = vmatpush1.msra.mxu0 0.0
    %1323 = vmatprep.subr.mxu0 0.0
    %1324 = vmatpush1.msra.mxu0 0.0
    %1325 = vmatprep.subr.mxu0 0.0
    %1326 = vmatpush1.msra.mxu0 0.0
    %1327 = vmatprep.subr.mxu0 0.0
    %1328 = vmatpush1.msra.mxu0 0.0
    %1329 = vmatprep.subr.mxu0 0.0
    %1330 = vmatpush1.msra.mxu0 0.0
    %1331 = vmatprep.subr.mxu0 0.0
    %1332 = vmatpush1.msra.mxu0 0.0
    %1333 = vmatprep.subr.mxu0 0.0
    %1334 = vmatpush1.msra.mxu0 0.0
    %1335 = vmatprep.subr.mxu0 0.0
    %1336 = vmatpush1.msra.mxu0 0.0
    %1337 = vmatprep.subr.mxu0 0.0
    %1338 = vmatpush1.msra.mxu0 0.0
    %1339 = vmatprep.subr.mxu0 0.0
    %1340 = vmatpush1.msra.mxu0 0.0
    %1341 = vmatprep.subr.mxu0 0.0
    %1342 = vmatpush1.msra.mxu0 0.0
    %1343 = vmatprep.subr.mxu0 0.0
    %1344 = vmatpush1.msra.mxu0 0.0
    %1345 = vmatprep.subr.mxu0 0.0
    %1346 = vmatpush1.msra.mxu0 0.0
    %1347 = vmatprep.subr.mxu0 0.0
    %1348 = vmatpush1.msra.mxu0 0.0
    %1349 = vmatprep.subr.mxu0 0.0
    %1350 = vmatpush1.msra.mxu0 0.0
    %1351 = vmatprep.subr.mxu0 0.0
    %1352 = vmatpush1.msra.mxu0 0.0
    %1353 = vmatprep.subr.mxu0 0.0
    %1354 = vmatpush1.msra.mxu0 0.0
    %1355 = vmatprep.subr.mxu0 0.0
    %1356 = vmatpush1.msra.mxu0 0.0
    %1357 = vmatprep.subr.mxu0 0.0
    %1358 = vmatpush1.msra.mxu0 0.0
    %1359 = vmatprep.subr.mxu0 0.0
    %1360 = vmatpush1.msra.mxu0 0.0
    %1361 = vmatprep.subr.mxu0 0.0
    %1362 = vmatpush1.msra.mxu0 0.0
    %1363 = vmatprep.subr.mxu0 0.0
    %1364 = vmatpush1.msra.mxu0 0.0
    %1365 = vmatprep.subr.mxu0 0.0
    %1366 = vmatpush1.msra.mxu0 0.0
    %1367 = vmatprep.mubr.f32.mxu0 0.0
    %1368 = vmatmul.mubr.f32.gmra.mrb[0].mxu0 %v129
    %v1369 = vpop.f32.mrb[0].mxu0
    %v1370 = vadd.f32 %v1301, %v1369
    %v1371 = vpop.f32.mrb[0].mxu0
    %1372 = vmatprep.mubr.f32.mxu0 0.0
    %1373 = vmatmul.mubr.f32.gmra.mrb[0].mxu0 %v132
    %v1374 = vpop.f32.mrb[0].mxu0
    %v1375 = vadd.f32 %v1301, %v1374
    %v1376 = vpop.f32.mrb[0].mxu0
    %1377 = vdwg.mxu0
    %s1378 = scalar_lea.vmem %s5, 64
    %v1379 = vld [vmem:[%s1378] sm:$0xff]
    %v1380 = vld [vmem:[%s1378 + $0x8] sm:$0xff]
    %v1381 = vld [vmem:[%s1378 + $0x10] sm:$0xff]
    %v1382 = vld [vmem:[%s1378 + $0x18] sm:$0xff]
    %s1383 = scalar_lea.vmem %s8, 2
    %v1384 = vld [vmem:[%s1383] sm:$0x1]
    %v1386 = vlaneseq
    %v1387 = vshrl.u32 %v1386, 7
    %v1388 = vsub.s32 0, %v1387
    %v1389 = vrot.slane %v1384, %v1388
    %1391 = vmatprep.subr.mxu0 0.0
    %1392 = vmatpush1.msra.mxu0 %v1379
    %1393 = vmatprep.subr.mxu0 0.0
    %1394 = vmatpush1.msra.mxu0 %v1380
    %1395 = vmatprep.subr.mxu0 0.0
    %1396 = vmatpush1.msra.mxu0 %v1381
    %1397 = vmatprep.subr.mxu0 0.0
    %1398 = vmatpush1.msra.mxu0 %v1382
    %1399 = vmatprep.subr.mxu0 0.0
    %1400 = vmatpush1.msra.mxu0 0.0
    %1401 = vmatprep.subr.mxu0 0.0
    %1402 = vmatpush1.msra.mxu0 0.0
    %1403 = vmatprep.subr.mxu0 0.0
    %1404 = vmatpush1.msra.mxu0 0.0
    %1405 = vmatprep.subr.mxu0 0.0
    %1406 = vmatpush1.msra.mxu0 0.0
    %1407 = vmatprep.subr.mxu0 0.0
    %1408 = vmatpush1.msra.mxu0 0.0
    %1409 = vmatprep.subr.mxu0 0.0
    %1410 = vmatpush1.msra.mxu0 0.0
    %1411 = vmatprep.subr.mxu0 0.0
    %1412 = vmatpush1.msra.mxu0 0.0
    %1413 = vmatprep.subr.mxu0 0.0
    %1414 = vmatpush1.msra.mxu0 0.0
    %1415 = vmatprep.subr.mxu0 0.0
    %1416 = vmatpush1.msra.mxu0 0.0
    %1417 = vmatprep.subr.mxu0 0.0
    %1418 = vmatpush1.msra.mxu0 0.0
    %1419 = vmatprep.subr.mxu0 0.0
    %1420 = vmatpush1.msra.mxu0 0.0
    %1421 = vmatprep.subr.mxu0 0.0
    %1422 = vmatpush1.msra.mxu0 0.0
    %1423 = vmatprep.subr.mxu0 0.0
    %1424 = vmatpush1.msra.mxu0 0.0
    %1425 = vmatprep.subr.mxu0 0.0
    %1426 = vmatpush1.msra.mxu0 0.0
    %1427 = vmatprep.subr.mxu0 0.0
    %1428 = vmatpush1.msra.mxu0 0.0
    %1429 = vmatprep.subr.mxu0 0.0
    %1430 = vmatpush1.msra.mxu0 0.0
    %1431 = vmatprep.subr.mxu0 0.0
    %1432 = vmatpush1.msra.mxu0 0.0
    %1433 = vmatprep.subr.mxu0 0.0
    %1434 = vmatpush1.msra.mxu0 0.0
    %1435 = vmatprep.subr.mxu0 0.0
    %1436 = vmatpush1.msra.mxu0 0.0
    %1437 = vmatprep.subr.mxu0 0.0
    %1438 = vmatpush1.msra.mxu0 0.0
    %1439 = vmatprep.subr.mxu0 0.0
    %1440 = vmatpush1.msra.mxu0 0.0
    %1441 = vmatprep.subr.mxu0 0.0
    %1442 = vmatpush1.msra.mxu0 0.0
    %1443 = vmatprep.subr.mxu0 0.0
    %1444 = vmatpush1.msra.mxu0 0.0
    %1445 = vmatprep.subr.mxu0 0.0
    %1446 = vmatpush1.msra.mxu0 0.0
    %1447 = vmatprep.subr.mxu0 0.0
    %1448 = vmatpush1.msra.mxu0 0.0
    %1449 = vmatprep.subr.mxu0 0.0
    %1450 = vmatpush1.msra.mxu0 0.0
    %1451 = vmatprep.subr.mxu0 0.0
    %1452 = vmatpush1.msra.mxu0 0.0
    %1453 = vmatprep.subr.mxu0 0.0
    %1454 = vmatpush1.msra.mxu0 0.0
    %1455 = vmatprep.mubr.f32.mxu0 0.0
    %1456 = vmatmul.mubr.f32.gmra.mrb[0].mxu0 %v307
    %v1457 = vpop.f32.mrb[0].mxu0
    %v1458 = vadd.f32 %v1389, %v1457
    %v1459 = vpop.f32.mrb[0].mxu0
    %1460 = vmatprep.mubr.f32.mxu0 0.0
    %1461 = vmatmul.mubr.f32.gmra.mrb[0].mxu0 %v310
    %v1462 = vpop.f32.mrb[0].mxu0
    %v1463 = vadd.f32 %v1389, %v1462
    %v1464 = vpop.f32.mrb[0].mxu0
    %1465 = vdwg.mxu0
    %v1466 = vmul.f32 %v1282, 0.35355338
    %v1467 = vmul.f32 %v1287, 0.35355338
    %v1469 = vsel %vm389, %v1466, 0
    %v1472 = vsel %vm389, %v1467, 0
    %v1475 = vsel %vm389, %v1370, 0
    %v1478 = vsel %vm389, %v1375, 0
    %1480 = vmatprep.subr.mxu0 0.0
    %1481 = vmatpush1.xpose.msra.mxu0 %v1475
    %1482 = vmatprep.subr.mxu0 0.0
    %1483 = vmatpush1.xpose.msra.mxu0 %v1478
    %1484 = vmatprep.subr.mxu0 0.0
    %1485 = vmatpush1.xpose.msra.mxu0 0.0
    %1486 = vmatprep.subr.mxu0 0.0
    %1487 = vmatpush1.xpose.msra.mxu0 0.0
    %1488 = vmatprep.subr.mxu0 0.0
    %1489 = vmatpush1.xpose.msra.mxu0 0.0
    %1490 = vmatprep.subr.mxu0 0.0
    %1491 = vmatpush1.xpose.msra.mxu0 0.0
    %1492 = vmatprep.subr.mxu0 0.0
    %1493 = vmatpush1.xpose.msra.mxu0 0.0
    %1494 = vmatprep.subr.mxu0 0.0
    %1495 = vmatpush1.xpose.msra.mxu0 0.0
    %1496 = vmatprep.subr.mxu0 0.0
    %1497 = vmatpush1.xpose.msra.mxu0 0.0
    %1498 = vmatprep.subr.mxu0 0.0
    %1499 = vmatpush1.xpose.msra.mxu0 0.0
    %1500 = vmatprep.subr.mxu0 0.0
    %1501 = vmatpush1.xpose.msra.mxu0 0.0
    %1502 = vmatprep.subr.mxu0 0.0
    %1503 = vmatpush1.xpose.msra.mxu0 0.0
    %1504 = vmatprep.subr.mxu0 0.0
    %1505 = vmatpush1.xpose.msra.mxu0 0.0
    %1506 = vmatprep.subr.mxu0 0.0
    %1507 = vmatpush1.xpose.msra.mxu0 0.0
    %1508 = vmatprep.subr.mxu0 0.0
    %1509 = vmatpush1.xpose.msra.mxu0 0.0
    %1510 = vmatprep.subr.mxu0 0.0
    %1511 = vmatpush1.xpose.msra.mxu0 0.0
    %1512 = vmatprep.subr.mxu0 0.0
    %1513 = vmatpush1.xpose.msra.mxu0 0.0
    %1514 = vmatprep.subr.mxu0 0.0
    %1515 = vmatpush1.xpose.msra.mxu0 0.0
    %1516 = vmatprep.subr.mxu0 0.0
    %1517 = vmatpush1.xpose.msra.mxu0 0.0
    %1518 = vmatprep.subr.mxu0 0.0
    %1519 = vmatpush1.xpose.msra.mxu0 0.0
    %1520 = vmatprep.subr.mxu0 0.0
    %1521 = vmatpush1.xpose.msra.mxu0 0.0
    %1522 = vmatprep.subr.mxu0 0.0
    %1523 = vmatpush1.xpose.msra.mxu0 0.0
    %1524 = vmatprep.subr.mxu0 0.0
    %1525 = vmatpush1.xpose.msra.mxu0 0.0
    %1526 = vmatprep.subr.mxu0 0.0
    %1527 = vmatpush1.xpose.msra.mxu0 0.0
    %1528 = vmatprep.subr.mxu0 0.0
    %1529 = vmatpush1.xpose.msra.mxu0 0.0
    %1530 = vmatprep.subr.mxu0 0.0
    %1531 = vmatpush1.xpose.msra.mxu0 0.0
    %1532 = vmatprep.subr.mxu0 0.0
    %1533 = vmatpush1.xpose.msra.mxu0 0.0
    %1534 = vmatprep.subr.mxu0 0.0
    %1535 = vmatpush1.xpose.msra.mxu0 0.0
    %1536 = vmatprep.subr.mxu0 0.0
    %1537 = vmatpush1.xpose.msra.mxu0 0.0
    %1538 = vmatprep.subr.mxu0 0.0
    %1539 = vmatpush1.xpose.msra.mxu0 0.0
    %1540 = vmatprep.subr.mxu0 0.0
    %1541 = vmatpush1.xpose.msra.mxu0 0.0
    %1542 = vmatprep.subr.mxu0 0.0
    %1543 = vmatpush1.xpose.msra.mxu0 0.0
    %1544 = vmatprep.mubr.f32.mxu0 0.0
    %1545 = vmatmul.mubr.f32.gmra.mrb[0].mxu0 %v1469
    %v1546 = vpop.f32.mrb[0].mxu0
    %v1547 = vadd.f32 %v67, %v1546
    %v1548 = vpop.f32.mrb[0].mxu0
    %1549 = vmatprep.mubr.f32.mxu0 0.0
    %1550 = vmatmul.mubr.f32.gmra.mrb[0].mxu0 %v1472
    %v1551 = vpop.f32.mrb[0].mxu0
    %v1552 = vadd.f32 %v68, %v1551
    %v1553 = vpop.f32.mrb[0].mxu0
    %1554 = vdwg.mxu0
    %v1555 = vsel %vm477, %v1547, -inf
    %1556 = vmax.xlane.f32.xlu0 %v1555
    %v1557 = vpop.xlane.xlu0 %1556
    %v1558 = vsel %vm477, %v1552, -inf
    %1559 = vmax.xlane.f32.xlu0 %v1558
    %v1560 = vpop.xlane.xlu0 %1559
    %v1561 = vsub.f32 %v1547, %v1557
    %v1562 = vsub.f32 %v1552, %v1560
    %v1563 = vmul.f32 %v1561, 1.442695
    %v1564 = vpow.pop %v1563
    %v1565 = vmul.f32 %v1562, 1.442695
    %v1566 = vpow.pop %v1565
    %v1568 = vsel %vm477, %v1564, 0
    %v1571 = vsel %vm477, %v1566, 0
    %1573 = vmatprep.subr.mxu0 0.0
    %1574 = vmatpush1.msra.mxu0 %v1458
    %1575 = vmatprep.subr.mxu0 0.0
    %1576 = vmatpush1.msra.mxu0 %v1463
    %1577 = vmatprep.subr.mxu0 0.0
    %1578 = vmatpush1.msra.mxu0 0.0
    %1579 = vmatprep.subr.mxu0 0.0
    %1580 = vmatpush1.msra.mxu0 0.0
    %1581 = vmatprep.subr.mxu0 0.0
    %1582 = vmatpush1.msra.mxu0 0.0
    %1583 = vmatprep.subr.mxu0 0.0
    %1584 = vmatpush1.msra.mxu0 0.0
    %1585 = vmatprep.subr.mxu0 0.0
    %1586 = vmatpush1.msra.mxu0 0.0
    %1587 = vmatprep.subr.mxu0 0.0
    %1588 = vmatpush1.msra.mxu0 0.0
    %1589 = vmatprep.subr.mxu0 0.0
    %1590 = vmatpush1.msra.mxu0 0.0
    %1591 = vmatprep.subr.mxu0 0.0
    %1592 = vmatpush1.msra.mxu0 0.0
    %1593 = vmatprep.subr.mxu0 0.0
    %1594 = vmatpush1.msra.mxu0 0.0
    %1595 = vmatprep.subr.mxu0 0.0
    %1596 = vmatpush1.msra.mxu0 0.0
    %1597 = vmatprep.subr.mxu0 0.0
    %1598 = vmatpush1.msra.mxu0 0.0
    %1599 = vmatprep.subr.mxu0 0.0
    %1600 = vmatpush1.msra.mxu0 0.0
    %1601 = vmatprep.subr.mxu0 0.0
    %1602 = vmatpush1.msra.mxu0 0.0
    %1603 = vmatprep.subr.mxu0 0.0
    %1604 = vmatpush1.msra.mxu0 0.0
    %1605 = vmatprep.subr.mxu0 0.0
    %1606 = vmatpush1.msra.mxu0 0.0
    %1607 = vmatprep.subr.mxu0 0.0
    %1608 = vmatpush1.msra.mxu0 0.0
    %1609 = vmatprep.subr.mxu0 0.0
    %1610 = vmatpush1.msra.mxu0 0.0
    %1611 = vmatprep.subr.mxu0 0.0
    %1612 = vmatpush1.msra.mxu0 0.0
    %1613 = vmatprep.subr.mxu0 0.0
    %1614 = vmatpush1.msra.mxu0 0.0
    %1615 = vmatprep.subr.mxu0 0.0
    %1616 = vmatpush1.msra.mxu0 0.0
    %1617 = vmatprep.subr.mxu0 0.0
    %1618 = vmatpush1.msra.mxu0 0.0
    %1619 = vmatprep.subr.mxu0 0.0
    %1620 = vmatpush1.msra.mxu0 0.0
    %1621 = vmatprep.subr.mxu0 0.0
    %1622 = vmatpush1.msra.mxu0 0.0
    %1623 = vmatprep.subr.mxu0 0.0
    %1624 = vmatpush1.msra.mxu0 0.0
    %1625 = vmatprep.subr.mxu0 0.0
    %1626 = vmatpush1.msra.mxu0 0.0
    %1627 = vmatprep.subr.mxu0 0.0
    %1628 = vmatpush1.msra.mxu0 0.0
    %1629 = vmatprep.subr.mxu0 0.0
    %1630 = vmatpush1.msra.mxu0 0.0
    %1631 = vmatprep.subr.mxu0 0.0
    %1632 = vmatpush1.msra.mxu0 0.0
    %1633 = vmatprep.subr.mxu0 0.0
    %1634 = vmatpush1.msra.mxu0 0.0
    %1635 = vmatprep.subr.mxu0 0.0
    %1636 = vmatpush1.msra.mxu0 0.0
    %1637 = vmatprep.mubr.f32.mxu0 0.0
    %1638 = vmatmul.mubr.f32.gmra.mrb[0].mxu0 %v1568
    %v1639 = vpop.f32.mrb[0].mxu0
    %v1640 = vadd.f32 0.0, %v1639
    %v1641 = vpop.f32.mrb[0].mxu0
    %1642 = vmatprep.mubr.f32.mxu0 0.0
    %1643 = vmatmul.mubr.f32.gmra.mrb[0].mxu0 %v1571
    %v1644 = vpop.f32.mrb[0].mxu0
    %v1645 = vadd.f32 0.0, %v1644
    %v1646 = vpop.f32.mrb[0].mxu0
    %1647 = vdwg.mxu0
    %v1648 = vsel %vm477, %v1564, 0.0
    %1649 = vadd.xlane.f32.xlu0 %v1648
    %v1650 = vpop.xlane.xlu0 %1649
    %v1651 = vsel %vm477, %v1566, 0.0
    %1652 = vadd.xlane.f32.xlu0 %v1651
    %v1653 = vpop.xlane.xlu0 %1652
    %v1654 = vrcp.pop %v1650
    %v1655 = vrcp.pop %v1653
    %v1656 = vmul.f32 %v1640, %v1654
    %v1657 = vmul.f32 %v1645, %v1655
    %s1658 = scalar_lea.vmem %s9, 16
    %v1659 = vld [vmem:[%s1658] sm:$0xff]
    %v1661 = vsel %vm389, %v1656, 0
    %v1664 = vsel %vm389, %v1657, 0
    %1666 = vmatprep.subr.mxu0 0.0
    %1667 = vmatpush1.msra.mxu0 %v1659
    %1668 = vmatprep.subr.mxu0 0.0
    %1669 = vmatpush1.msra.mxu0 0.0
    %1670 = vmatprep.subr.mxu0 0.0
    %1671 = vmatpush1.msra.mxu0 0.0
    %1672 = vmatprep.subr.mxu0 0.0
    %1673 = vmatpush1.msra.mxu0 0.0
    %1674 = vmatprep.subr.mxu0 0.0
    %1675 = vmatpush1.msra.mxu0 0.0
    %1676 = vmatprep.subr.mxu0 0.0
    %1677 = vmatpush1.msra.mxu0 0.0
    %1678 = vmatprep.subr.mxu0 0.0
    %1679 = vmatpush1.msra.mxu0 0.0
    %1680 = vmatprep.subr.mxu0 0.0
    %1681 = vmatpush1.msra.mxu0 0.0
    %1682 = vmatprep.subr.mxu0 0.0
    %1683 = vmatpush1.msra.mxu0 0.0
    %1684 = vmatprep.subr.mxu0 0.0
    %1685 = vmatpush1.msra.mxu0 0.0
    %1686 = vmatprep.subr.mxu0 0.0
    %1687 = vmatpush1.msra.mxu0 0.0
    %1688 = vmatprep.subr.mxu0 0.0
    %1689 = vmatpush1.msra.mxu0 0.0
    %1690 = vmatprep.subr.mxu0 0.0
    %1691 = vmatpush1.msra.mxu0 0.0
    %1692 = vmatprep.subr.mxu0 0.0
    %1693 = vmatpush1.msra.mxu0 0.0
    %1694 = vmatprep.subr.mxu0 0.0
    %1695 = vmatpush1.msra.mxu0 0.0
    %1696 = vmatprep.subr.mxu0 0.0
    %1697 = vmatpush1.msra.mxu0 0.0
    %1698 = vmatprep.subr.mxu0 0.0
    %1699 = vmatpush1.msra.mxu0 0.0
    %1700 = vmatprep.subr.mxu0 0.0
    %1701 = vmatpush1.msra.mxu0 0.0
    %1702 = vmatprep.subr.mxu0 0.0
    %1703 = vmatpush1.msra.mxu0 0.0
    %1704 = vmatprep.subr.mxu0 0.0
    %1705 = vmatpush1.msra.mxu0 0.0
    %1706 = vmatprep.subr.mxu0 0.0
    %1707 = vmatpush1.msra.mxu0 0.0
    %1708 = vmatprep.subr.mxu0 0.0
    %1709 = vmatpush1.msra.mxu0 0.0
    %1710 = vmatprep.subr.mxu0 0.0
    %1711 = vmatpush1.msra.mxu0 0.0
    %1712 = vmatprep.subr.mxu0 0.0
    %1713 = vmatpush1.msra.mxu0 0.0
    %1714 = vmatprep.subr.mxu0 0.0
    %1715 = vmatpush1.msra.mxu0 0.0
    %1716 = vmatprep.subr.mxu0 0.0
    %1717 = vmatpush1.msra.mxu0 0.0
    %1718 = vmatprep.subr.mxu0 0.0
    %1719 = vmatpush1.msra.mxu0 0.0
    %1720 = vmatprep.subr.mxu0 0.0
    %1721 = vmatpush1.msra.mxu0 0.0
    %1722 = vmatprep.subr.mxu0 0.0
    %1723 = vmatpush1.msra.mxu0 0.0
    %1724 = vmatprep.subr.mxu0 0.0
    %1725 = vmatpush1.msra.mxu0 0.0
    %1726 = vmatprep.subr.mxu0 0.0
    %1727 = vmatpush1.msra.mxu0 0.0
    %1728 = vmatprep.subr.mxu0 0.0
    %1729 = vmatpush1.msra.mxu0 0.0
    %1730 = vmatprep.mubr.f32.mxu0 0.0
    %1731 = vmatmul.mubr.f32.gmra.mrb[0].mxu0 %v1661
    %v1732 = vpop.f32.mrb[0].mxu0
    %v1733 = vadd.f32 0.0, %v1732
    %v1734 = vpop.f32.mrb[0].mxu0
    %1735 = vmatprep.mubr.f32.mxu0 0.0
    %1736 = vmatmul.mubr.f32.gmra.mrb[0].mxu0 %v1664
    %v1737 = vpop.f32.mrb[0].mxu0
    %v1738 = vadd.f32 0.0, %v1737
    %v1739 = vpop.f32.mrb[0].mxu0
    %1740 = vdwg.mxu0
    %v1741 = vadd.f32 %v1194, %v1733
    %v1742 = vadd.f32 %v1199, %v1738
    %s1743 = scalar_lea.vmem %s3, 96
    %v1744 = vld [vmem:[%s1743] sm:$0xff]
    %v1745 = vld [vmem:[%s1743 + $0x8] sm:$0xff]
    %v1746 = vld [vmem:[%s1743 + $0x10] sm:$0xff]
    %v1747 = vld [vmem:[%s1743 + $0x18] sm:$0xff]
    %s1748 = scalar_lea.vmem %s6, 3
    %v1749 = vld [vmem:[%s1748] sm:$0x1]
    %v1751 = vlaneseq
    %v1752 = vshrl.u32 %v1751, 7
    %v1753 = vsub.s32 0, %v1752
    %v1754 = vrot.slane %v1749, %v1753
    %1756 = vmatprep.subr.mxu0 0.0
    %1757 = vmatpush1.msra.mxu0 %v1744
    %1758 = vmatprep.subr.mxu0 0.0
    %1759 = vmatpush1.msra.mxu0 %v1745
    %1760 = vmatprep.subr.mxu0 0.0
    %1761 = vmatpush1.msra.mxu0 %v1746
    %1762 = vmatprep.subr.mxu0 0.0
    %1763 = vmatpush1.msra.mxu0 %v1747
    %1764 = vmatprep.subr.mxu0 0.0
    %1765 = vmatpush1.msra.mxu0 0.0
    %1766 = vmatprep.subr.mxu0 0.0
    %1767 = vmatpush1.msra.mxu0 0.0
    %1768 = vmatprep.subr.mxu0 0.0
    %1769 = vmatpush1.msra.mxu0 0.0
    %1770 = vmatprep.subr.mxu0 0.0
    %1771 = vmatpush1.msra.mxu0 0.0
    %1772 = vmatprep.subr.mxu0 0.0
    %1773 = vmatpush1.msra.mxu0 0.0
    %1774 = vmatprep.subr.mxu0 0.0
    %1775 = vmatpush1.msra.mxu0 0.0
    %1776 = vmatprep.subr.mxu0 0.0
    %1777 = vmatpush1.msra.mxu0 0.0
    %1778 = vmatprep.subr.mxu0 0.0
    %1779 = vmatpush1.msra.mxu0 0.0
    %1780 = vmatprep.subr.mxu0 0.0
    %1781 = vmatpush1.msra.mxu0 0.0
    %1782 = vmatprep.subr.mxu0 0.0
    %1783 = vmatpush1.msra.mxu0 0.0
    %1784 = vmatprep.subr.mxu0 0.0
    %1785 = vmatpush1.msra.mxu0 0.0
    %1786 = vmatprep.subr.mxu0 0.0
    %1787 = vmatpush1.msra.mxu0 0.0
    %1788 = vmatprep.subr.mxu0 0.0
    %1789 = vmatpush1.msra.mxu0 0.0
    %1790 = vmatprep.subr.mxu0 0.0
    %1791 = vmatpush1.msra.mxu0 0.0
    %1792 = vmatprep.subr.mxu0 0.0
    %1793 = vmatpush1.msra.mxu0 0.0
    %1794 = vmatprep.subr.mxu0 0.0
    %1795 = vmatpush1.msra.mxu0 0.0
    %1796 = vmatprep.subr.mxu0 0.0
    %1797 = vmatpush1.msra.mxu0 0.0
    %1798 = vmatprep.subr.mxu0 0.0
    %1799 = vmatpush1.msra.mxu0 0.0
    %1800 = vmatprep.subr.mxu0 0.0
    %1801 = vmatpush1.msra.mxu0 0.0
    %1802 = vmatprep.subr.mxu0 0.0
    %1803 = vmatpush1.msra.mxu0 0.0
    %1804 = vmatprep.subr.mxu0 0.0
    %1805 = vmatpush1.msra.mxu0 0.0
    %1806 = vmatprep.subr.mxu0 0.0
    %1807 = vmatpush1.msra.mxu0 0.0
    %1808 = vmatprep.subr.mxu0 0.0
    %1809 = vmatpush1.msra.mxu0 0.0
    %1810 = vmatprep.subr.mxu0 0.0
    %1811 = vmatpush1.msra.mxu0 0.0
    %1812 = vmatprep.subr.mxu0 0.0
    %1813 = vmatpush1.msra.mxu0 0.0
    %1814 = vmatprep.subr.mxu0 0.0
    %1815 = vmatpush1.msra.mxu0 0.0
    %1816 = vmatprep.subr.mxu0 0.0
    %1817 = vmatpush1.msra.mxu0 0.0
    %1818 = vmatprep.subr.mxu0 0.0
    %1819 = vmatpush1.msra.mxu0 0.0
    %1820 = vmatprep.mubr.f32.mxu0 0.0
    %1821 = vmatmul.mubr.f32.gmra.mrb[0].mxu0 %v129
    %v1822 = vpop.f32.mrb[0].mxu0
    %v1823 = vadd.f32 %v1754, %v1822
    %v1824 = vpop.f32.mrb[0].mxu0
    %1825 = vmatprep.mubr.f32.mxu0 0.0
    %1826 = vmatmul.mubr.f32.gmra.mrb[0].mxu0 %v132
    %v1827 = vpop.f32.mrb[0].mxu0
    %v1828 = vadd.f32 %v1754, %v1827
    %v1829 = vpop.f32.mrb[0].mxu0
    %1830 = vdwg.mxu0
    %s1831 = scalar_lea.vmem %s4, 96
    %v1832 = vld [vmem:[%s1831] sm:$0xff]
    %v1833 = vld [vmem:[%s1831 + $0x8] sm:$0xff]
    %v1834 = vld [vmem:[%s1831 + $0x10] sm:$0xff]
    %v1835 = vld [vmem:[%s1831 + $0x18] sm:$0xff]
    %s1836 = scalar_lea.vmem %s7, 3
    %v1837 = vld [vmem:[%s1836] sm:$0x1]
    %v1839 = vlaneseq
    %v1840 = vshrl.u32 %v1839, 7
    %v1841 = vsub.s32 0, %v1840
    %v1842 = vrot.slane %v1837, %v1841
    %1844 = vmatprep.subr.mxu0 0.0
    %1845 = vmatpush1.msra.mxu0 %v1832
    %1846 = vmatprep.subr.mxu0 0.0
    %1847 = vmatpush1.msra.mxu0 %v1833
    %1848 = vmatprep.subr.mxu0 0.0
    %1849 = vmatpush1.msra.mxu0 %v1834
    %1850 = vmatprep.subr.mxu0 0.0
    %1851 = vmatpush1.msra.mxu0 %v1835
    %1852 = vmatprep.subr.mxu0 0.0
    %1853 = vmatpush1.msra.mxu0 0.0
    %1854 = vmatprep.subr.mxu0 0.0
    %1855 = vmatpush1.msra.mxu0 0.0
    %1856 = vmatprep.subr.mxu0 0.0
    %1857 = vmatpush1.msra.mxu0 0.0
    %1858 = vmatprep.subr.mxu0 0.0
    %1859 = vmatpush1.msra.mxu0 0.0
    %1860 = vmatprep.subr.mxu0 0.0
    %1861 = vmatpush1.msra.mxu0 0.0
    %1862 = vmatprep.subr.mxu0 0.0
    %1863 = vmatpush1.msra.mxu0 0.0
    %1864 = vmatprep.subr.mxu0 0.0
    %1865 = vmatpush1.msra.mxu0 0.0
    %1866 = vmatprep.subr.mxu0 0.0
    %1867 = vmatpush1.msra.mxu0 0.0
    %1868 = vmatprep.subr.mxu0 0.0
    %1869 = vmatpush1.msra.mxu0 0.0
    %1870 = vmatprep.subr.mxu0 0.0
    %1871 = vmatpush1.msra.mxu0 0.0
    %1872 = vmatprep.subr.mxu0 0.0
    %1873 = vmatpush1.msra.mxu0 0.0
    %1874 = vmatprep.subr.mxu0 0.0
    %1875 = vmatpush1.msra.mxu0 0.0
    %1876 = vmatprep.subr.mxu0 0.0
    %1877 = vmatpush1.msra.mxu0 0.0
    %1878 = vmatprep.subr.mxu0 0.0
    %1879 = vmatpush1.msra.mxu0 0.0
    %1880 = vmatprep.subr.mxu0 0.0
    %1881 = vmatpush1.msra.mxu0 0.0
    %1882 = vmatprep.subr.mxu0 0.0
    %1883 = vmatpush1.msra.mxu0 0.0
    %1884 = vmatprep.subr.mxu0 0.0
    %1885 = vmatpush1.msra.mxu0 0.0
    %1886 = vmatprep.subr.mxu0 0.0
    %1887 = vmatpush1.msra.mxu0 0.0
    %1888 = vmatprep.subr.mxu0 0.0
    %1889 = vmatpush1.msra.mxu0 0.0
    %1890 = vmatprep.subr.mxu0 0.0
    %1891 = vmatpush1.msra.mxu0 0.0
    %1892 = vmatprep.subr.mxu0 0.0
    %1893 = vmatpush1.msra.mxu0 0.0
    %1894 = vmatprep.subr.mxu0 0.0
    %1895 = vmatpush1.msra.mxu0 0.0
    %1896 = vmatprep.subr.mxu0 0.0
    %1897 = vmatpush1.msra.mxu0 0.0
    %1898 = vmatprep.subr.mxu0 0.0
    %1899 = vmatpush1.msra.mxu0 0.0
    %1900 = vmatprep.subr.mxu0 0.0
    %1901 = vmatpush1.msra.mxu0 0.0
    %1902 = vmatprep.subr.mxu0 0.0
    %1903 = vmatpush1.msra.mxu0 0.0
    %1904 = vmatprep.subr.mxu0 0.0
    %1905 = vmatpush1.msra.mxu0 0.0
    %1906 = vmatprep.subr.mxu0 0.0
    %1907 = vmatpush1.msra.mxu0 0.0
    %1908 = vmatprep.mubr.f32.mxu0 0.0
    %1909 = vmatmul.mubr.f32.gmra.mrb[0].mxu0 %v129
    %v1910 = vpop.f32.mrb[0].mxu0
    %v1911 = vadd.f32 %v1842, %v1910
    %v1912 = vpop.f32.mrb[0].mxu0
    %1913 = vmatprep.mubr.f32.mxu0 0.0
    %1914 = vmatmul.mubr.f32.gmra.mrb[0].mxu0 %v132
    %v1915 = vpop.f32.mrb[0].mxu0
    %v1916 = vadd.f32 %v1842, %v1915
    %v1917 = vpop.f32.mrb[0].mxu0
    %1918 = vdwg.mxu0
    %s1919 = scalar_lea.vmem %s5, 96
    %v1920 = vld [vmem:[%s1919] sm:$0xff]
    %v1921 = vld [vmem:[%s1919 + $0x8] sm:$0xff]
    %v1922 = vld [vmem:[%s1919 + $0x10] sm:$0xff]
    %v1923 = vld [vmem:[%s1919 + $0x18] sm:$0xff]
    %s1924 = scalar_lea.vmem %s8, 3
    %v1925 = vld [vmem:[%s1924] sm:$0x1]
    %v1927 = vlaneseq
    %v1928 = vshrl.u32 %v1927, 7
    %v1929 = vsub.s32 0, %v1928
    %v1930 = vrot.slane %v1925, %v1929
    %1932 = vmatprep.subr.mxu0 0.0
    %1933 = vmatpush1.msra.mxu0 %v1920
    %1934 = vmatprep.subr.mxu0 0.0
    %1935 = vmatpush1.msra.mxu0 %v1921
    %1936 = vmatprep.subr.mxu0 0.0
    %1937 = vmatpush1.msra.mxu0 %v1922
    %1938 = vmatprep.subr.mxu0 0.0
    %1939 = vmatpush1.msra.mxu0 %v1923
    %1940 = vmatprep.subr.mxu0 0.0
    %1941 = vmatpush1.msra.mxu0 0.0
    %1942 = vmatprep.subr.mxu0 0.0
    %1943 = vmatpush1.msra.mxu0 0.0
    %1944 = vmatprep.subr.mxu0 0.0
    %1945 = vmatpush1.msra.mxu0 0.0
    %1946 = vmatprep.subr.mxu0 0.0
    %1947 = vmatpush1.msra.mxu0 0.0
    %1948 = vmatprep.subr.mxu0 0.0
    %1949 = vmatpush1.msra.mxu0 0.0
    %1950 = vmatprep.subr.mxu0 0.0
    %1951 = vmatpush1.msra.mxu0 0.0
    %1952 = vmatprep.subr.mxu0 0.0
    %1953 = vmatpush1.msra.mxu0 0.0
    %1954 = vmatprep.subr.mxu0 0.0
    %1955 = vmatpush1.msra.mxu0 0.0
    %1956 = vmatprep.subr.mxu0 0.0
    %1957 = vmatpush1.msra.mxu0 0.0
    %1958 = vmatprep.subr.mxu0 0.0
    %1959 = vmatpush1.msra.mxu0 0.0
    %1960 = vmatprep.subr.mxu0 0.0
    %1961 = vmatpush1.msra.mxu0 0.0
    %1962 = vmatprep.subr.mxu0 0.0
    %1963 = vmatpush1.msra.mxu0 0.0
    %1964 = vmatprep.subr.mxu0 0.0
    %1965 = vmatpush1.msra.mxu0 0.0
    %1966 = vmatprep.subr.mxu0 0.0
    %1967 = vmatpush1.msra.mxu0 0.0
    %1968 = vmatprep.subr.mxu0 0.0
    %1969 = vmatpush1.msra.mxu0 0.0
    %1970 = vmatprep.subr.mxu0 0.0
    %1971 = vmatpush1.msra.mxu0 0.0
    %1972 = vmatprep.subr.mxu0 0.0
    %1973 = vmatpush1.msra.mxu0 0.0
    %1974 = vmatprep.subr.mxu0 0.0
    %1975 = vmatpush1.msra.mxu0 0.0
    %1976 = vmatprep.subr.mxu0 0.0
    %1977 = vmatpush1.msra.mxu0 0.0
    %1978 = vmatprep.subr.mxu0 0.0
    %1979 = vmatpush1.msra.mxu0 0.0
    %1980 = vmatprep.subr.mxu0 0.0
    %1981 = vmatpush1.msra.mxu0 0.0
    %1982 = vmatprep.subr.mxu0 0.0
    %1983 = vmatpush1.msra.mxu0 0.0
    %1984 = vmatprep.subr.mxu0 0.0
    %1985 = vmatpush1.msra.mxu0 0.0
    %1986 = vmatprep.subr.mxu0 0.0
    %1987 = vmatpush1.msra.mxu0 0.0
    %1988 = vmatprep.subr.mxu0 0.0
    %1989 = vmatpush1.msra.mxu0 0.0
    %1990 = vmatprep.subr.mxu0 0.0
    %1991 = vmatpush1.msra.mxu0 0.0
    %1992 = vmatprep.subr.mxu0 0.0
    %1993 = vmatpush1.msra.mxu0 0.0
    %1994 = vmatprep.subr.mxu0 0.0
    %1995 = vmatpush1.msra.mxu0 0.0
    %1996 = vmatprep.mubr.f32.mxu0 0.0
    %1997 = vmatmul.mubr.f32.gmra.mrb[0].mxu0 %v307
    %v1998 = vpop.f32.mrb[0].mxu0
    %v1999 = vadd.f32 %v1930, %v1998
    %v2000 = vpop.f32.mrb[0].mxu0
    %2001 = vmatprep.mubr.f32.mxu0 0.0
    %2002 = vmatmul.mubr.f32.gmra.mrb[0].mxu0 %v310
    %v2003 = vpop.f32.mrb[0].mxu0
    %v2004 = vadd.f32 %v1930, %v2003
    %v2005 = vpop.f32.mrb[0].mxu0
    %2006 = vdwg.mxu0
    %v2007 = vmul.f32 %v1823, 0.35355338
    %v2008 = vmul.f32 %v1828, 0.35355338
    %v2010 = vsel %vm389, %v2007, 0
    %v2013 = vsel %vm389, %v2008, 0
    %v2016 = vsel %vm389, %v1911, 0
    %v2019 = vsel %vm389, %v1916, 0
    %2021 = vmatprep.subr.mxu0 0.0
    %2022 = vmatpush1.xpose.msra.mxu0 %v2016
    %2023 = vmatprep.subr.mxu0 0.0
    %2024 = vmatpush1.xpose.msra.mxu0 %v2019
    %2025 = vmatprep.subr.mxu0 0.0
    %2026 = vmatpush1.xpose.msra.mxu0 0.0
    %2027 = vmatprep.subr.mxu0 0.0
    %2028 = vmatpush1.xpose.msra.mxu0 0.0
    %2029 = vmatprep.subr.mxu0 0.0
    %2030 = vmatpush1.xpose.msra.mxu0 0.0
    %2031 = vmatprep.subr.mxu0 0.0
    %2032 = vmatpush1.xpose.msra.mxu0 0.0
    %2033 = vmatprep.subr.mxu0 0.0
    %2034 = vmatpush1.xpose.msra.mxu0 0.0
    %2035 = vmatprep.subr.mxu0 0.0
    %2036 = vmatpush1.xpose.msra.mxu0 0.0
    %2037 = vmatprep.subr.mxu0 0.0
    %2038 = vmatpush1.xpose.msra.mxu0 0.0
    %2039 = vmatprep.subr.mxu0 0.0
    %2040 = vmatpush1.xpose.msra.mxu0 0.0
    %2041 = vmatprep.subr.mxu0 0.0
    %2042 = vmatpush1.xpose.msra.mxu0 0.0
    %2043 = vmatprep.subr.mxu0 0.0
    %2044 = vmatpush1.xpose.msra.mxu0 0.0
    %2045 = vmatprep.subr.mxu0 0.0
    %2046 = vmatpush1.xpose.msra.mxu0 0.0
    %2047 = vmatprep.subr.mxu0 0.0
    %2048 = vmatpush1.xpose.msra.mxu0 0.0
    %2049 = vmatprep.subr.mxu0 0.0
    %2050 = vmatpush1.xpose.msra.mxu0 0.0
    %2051 = vmatprep.subr.mxu0 0.0
    %2052 = vmatpush1.xpose.msra.mxu0 0.0
    %2053 = vmatprep.subr.mxu0 0.0
    %2054 = vmatpush1.xpose.msra.mxu0 0.0
    %2055 = vmatprep.subr.mxu0 0.0
    %2056 = vmatpush1.xpose.msra.mxu0 0.0
    %2057 = vmatprep.subr.mxu0 0.0
    %2058 = vmatpush1.xpose.msra.mxu0 0.0
    %2059 = vmatprep.subr.mxu0 0.0
    %2060 = vmatpush1.xpose.msra.mxu0 0.0
    %2061 = vmatprep.subr.mxu0 0.0
    %2062 = vmatpush1.xpose.msra.mxu0 0.0
    %2063 = vmatprep.subr.mxu0 0.0
    %2064 = vmatpush1.xpose.msra.mxu0 0.0
    %2065 = vmatprep.subr.mxu0 0.0
    %2066 = vmatpush1.xpose.msra.mxu0 0.0
    %2067 = vmatprep.subr.mxu0 0.0
    %2068 = vmatpush1.xpose.msra.mxu0 0.0
    %2069 = vmatprep.subr.mxu0 0.0
    %2070 = vmatpush1.xpose.msra.mxu0 0.0
    %2071 = vmatprep.subr.mxu0 0.0
    %2072 = vmatpush1.xpose.msra.mxu0 0.0
    %2073 = vmatprep.subr.mxu0 0.0
    %2074 = vmatpush1.xpose.msra.mxu0 0.0
    %2075 = vmatprep.subr.mxu0 0.0
    %2076 = vmatpush1.xpose.msra.mxu0 0.0
    %2077 = vmatprep.subr.mxu0 0.0
    %2078 = vmatpush1.xpose.msra.mxu0 0.0
    %2079 = vmatprep.subr.mxu0 0.0
    %2080 = vmatpush1.xpose.msra.mxu0 0.0
    %2081 = vmatprep.subr.mxu0 0.0
    %2082 = vmatpush1.xpose.msra.mxu0 0.0
    %2083 = vmatprep.subr.mxu0 0.0
    %2084 = vmatpush1.xpose.msra.mxu0 0.0
    %2085 = vmatprep.mubr.f32.mxu0 0.0
    %2086 = vmatmul.mubr.f32.gmra.mrb[0].mxu0 %v2010
    %v2087 = vpop.f32.mrb[0].mxu0
    %v2088 = vadd.f32 %v67, %v2087
    %v2089 = vpop.f32.mrb[0].mxu0
    %2090 = vmatprep.mubr.f32.mxu0 0.0
    %2091 = vmatmul.mubr.f32.gmra.mrb[0].mxu0 %v2013
    %v2092 = vpop.f32.mrb[0].mxu0
    %v2093 = vadd.f32 %v68, %v2092
    %v2094 = vpop.f32.mrb[0].mxu0
    %2095 = vdwg.mxu0
    %v2096 = vsel %vm477, %v2088, -inf
    %2097 = vmax.xlane.f32.xlu0 %v2096
    %v2098 = vpop.xlane.xlu0 %2097
    %v2099 = vsel %vm477, %v2093, -inf
    %2100 = vmax.xlane.f32.xlu0 %v2099
    %v2101 = vpop.xlane.xlu0 %2100
    %v2102 = vsub.f32 %v2088, %v2098
    %v2103 = vsub.f32 %v2093, %v2101
    %v2104 = vmul.f32 %v2102, 1.442695
    %v2105 = vpow.pop %v2104
    %v2106 = vmul.f32 %v2103, 1.442695
    %v2107 = vpow.pop %v2106
    %v2109 = vsel %vm477, %v2105, 0
    %v2112 = vsel %vm477, %v2107, 0
    %2114 = vmatprep.subr.mxu0 0.0
    %2115 = vmatpush1.msra.mxu0 %v1999
    %2116 = vmatprep.subr.mxu0 0.0
    %2117 = vmatpush1.msra.mxu0 %v2004
    %2118 = vmatprep.subr.mxu0 0.0
    %2119 = vmatpush1.msra.mxu0 0.0
    %2120 = vmatprep.subr.mxu0 0.0
    %2121 = vmatpush1.msra.mxu0 0.0
    %2122 = vmatprep.subr.mxu0 0.0
    %2123 = vmatpush1.msra.mxu0 0.0
    %2124 = vmatprep.subr.mxu0 0.0
    %2125 = vmatpush1.msra.mxu0 0.0
    %2126 = vmatprep.subr.mxu0 0.0
    %2127 = vmatpush1.msra.mxu0 0.0
    %2128 = vmatprep.subr.mxu0 0.0
    %2129 = vmatpush1.msra.mxu0 0.0
    %2130 = vmatprep.subr.mxu0 0.0
    %2131 = vmatpush1.msra.mxu0 0.0
    %2132 = vmatprep.subr.mxu0 0.0
    %2133 = vmatpush1.msra.mxu0 0.0
    %2134 = vmatprep.subr.mxu0 0.0
    %2135 = vmatpush1.msra.mxu0 0.0
    %2136 = vmatprep.subr.mxu0 0.0
    %2137 = vmatpush1.msra.mxu0 0.0
    %2138 = vmatprep.subr.mxu0 0.0
    %2139 = vmatpush1.msra.mxu0 0.0
    %2140 = vmatprep.subr.mxu0 0.0
    %2141 = vmatpush1.msra.mxu0 0.0
    %2142 = vmatprep.subr.mxu0 0.0
    %2143 = vmatpush1.msra.mxu0 0.0
    %2144 = vmatprep.subr.mxu0 0.0
    %2145 = vmatpush1.msra.mxu0 0.0
    %2146 = vmatprep.subr.mxu0 0.0
    %2147 = vmatpush1.msra.mxu0 0.0
    %2148 = vmatprep.subr.mxu0 0.0
    %2149 = vmatpush1.msra.mxu0 0.0
    %2150 = vmatprep.subr.mxu0 0.0
    %2151 = vmatpush1.msra.mxu0 0.0
    %2152 = vmatprep.subr.mxu0 0.0
    %2153 = vmatpush1.msra.mxu0 0.0
    %2154 = vmatprep.subr.mxu0 0.0
    %2155 = vmatpush1.msra.mxu0 0.0
    %2156 = vmatprep.subr.mxu0 0.0
    %2157 = vmatpush1.msra.mxu0 0.0
    %2158 = vmatprep.subr.mxu0 0.0
    %2159 = vmatpush1.msra.mxu0 0.0
    %2160 = vmatprep.subr.mxu0 0.0
    %2161 = vmatpush1.msra.mxu0 0.0
    %2162 = vmatprep.subr.mxu0 0.0
    %2163 = vmatpush1.msra.mxu0 0.0
    %2164 = vmatprep.subr.mxu0 0.0
    %2165 = vmatpush1.msra.mxu0 0.0
    %2166 = vmatprep.subr.mxu0 0.0
    %2167 = vmatpush1.msra.mxu0 0.0
    %2168 = vmatprep.subr.mxu0 0.0
    %2169 = vmatpush1.msra.mxu0 0.0
    %2170 = vmatprep.subr.mxu0 0.0
    %2171 = vmatpush1.msra.mxu0 0.0
    %2172 = vmatprep.subr.mxu0 0.0
    %2173 = vmatpush1.msra.mxu0 0.0
    %2174 = vmatprep.subr.mxu0 0.0
    %2175 = vmatpush1.msra.mxu0 0.0
    %2176 = vmatprep.subr.mxu0 0.0
    %2177 = vmatpush1.msra.mxu0 0.0
    %2178 = vmatprep.mubr.f32.mxu0 0.0
    %2179 = vmatmul.mubr.f32.gmra.mrb[0].mxu0 %v2109
    %v2180 = vpop.f32.mrb[0].mxu0
    %v2181 = vadd.f32 0.0, %v2180
    %v2182 = vpop.f32.mrb[0].mxu0
    %2183 = vmatprep.mubr.f32.mxu0 0.0
    %2184 = vmatmul.mubr.f32.gmra.mrb[0].mxu0 %v2112
    %v2185 = vpop.f32.mrb[0].mxu0
    %v2186 = vadd.f32 0.0, %v2185
    %v2187 = vpop.f32.mrb[0].mxu0
    %2188 = vdwg.mxu0
    %v2189 = vsel %vm477, %v2105, 0.0
    %2190 = vadd.xlane.f32.xlu0 %v2189
    %v2191 = vpop.xlane.xlu0 %2190
    %v2192 = vsel %vm477, %v2107, 0.0
    %2193 = vadd.xlane.f32.xlu0 %v2192
    %v2194 = vpop.xlane.xlu0 %2193
    %v2195 = vrcp.pop %v2191
    %v2196 = vrcp.pop %v2194
    %v2197 = vmul.f32 %v2181, %v2195
    %v2198 = vmul.f32 %v2186, %v2196
    %s2199 = scalar_lea.vmem %s9, 24
    %v2200 = vld [vmem:[%s2199] sm:$0xff]
    %v2202 = vsel %vm389, %v2197, 0
    %v2205 = vsel %vm389, %v2198, 0
    %2207 = vmatprep.subr.mxu0 0.0
    %2208 = vmatpush1.msra.mxu0 %v2200
    %2209 = vmatprep.subr.mxu0 0.0
    %2210 = vmatpush1.msra.mxu0 0.0
    %2211 = vmatprep.subr.mxu0 0.0
    %2212 = vmatpush1.msra.mxu0 0.0
    %2213 = vmatprep.subr.mxu0 0.0
    %2214 = vmatpush1.msra.mxu0 0.0
    %2215 = vmatprep.subr.mxu0 0.0
    %2216 = vmatpush1.msra.mxu0 0.0
    %2217 = vmatprep.subr.mxu0 0.0
    %2218 = vmatpush1.msra.mxu0 0.0
    %2219 = vmatprep.subr.mxu0 0.0
    %2220 = vmatpush1.msra.mxu0 0.0
    %2221 = vmatprep.subr.mxu0 0.0
    %2222 = vmatpush1.msra.mxu0 0.0
    %2223 = vmatprep.subr.mxu0 0.0
    %2224 = vmatpush1.msra.mxu0 0.0
    %2225 = vmatprep.subr.mxu0 0.0
    %2226 = vmatpush1.msra.mxu0 0.0
    %2227 = vmatprep.subr.mxu0 0.0
    %2228 = vmatpush1.msra.mxu0 0.0
    %2229 = vmatprep.subr.mxu0 0.0
    %2230 = vmatpush1.msra.mxu0 0.0
    %2231 = vmatprep.subr.mxu0 0.0
    %2232 = vmatpush1.msra.mxu0 0.0
    %2233 = vmatprep.subr.mxu0 0.0
    %2234 = vmatpush1.msra.mxu0 0.0
    %2235 = vmatprep.subr.mxu0 0.0
    %2236 = vmatpush1.msra.mxu0 0.0
    %2237 = vmatprep.subr.mxu0 0.0
    %2238 = vmatpush1.msra.mxu0 0.0
    %2239 = vmatprep.subr.mxu0 0.0
    %2240 = vmatpush1.msra.mxu0 0.0
    %2241 = vmatprep.subr.mxu0 0.0
    %2242 = vmatpush1.msra.mxu0 0.0
    %2243 = vmatprep.subr.mxu0 0.0
    %2244 = vmatpush1.msra.mxu0 0.0
    %2245 = vmatprep.subr.mxu0 0.0
    %2246 = vmatpush1.msra.mxu0 0.0
    %2247 = vmatprep.subr.mxu0 0.0
    %2248 = vmatpush1.msra.mxu0 0.0
    %2249 = vmatprep.subr.mxu0 0.0
    %2250 = vmatpush1.msra.mxu0 0.0
    %2251 = vmatprep.subr.mxu0 0.0
    %2252 = vmatpush1.msra.mxu0 0.0
    %2253 = vmatprep.subr.mxu0 0.0
    %2254 = vmatpush1.msra.mxu0 0.0
    %2255 = vmatprep.subr.mxu0 0.0
    %2256 = vmatpush1.msra.mxu0 0.0
    %2257 = vmatprep.subr.mxu0 0.0
    %2258 = vmatpush1.msra.mxu0 0.0
    %2259 = vmatprep.subr.mxu0 0.0
    %2260 = vmatpush1.msra.mxu0 0.0
    %2261 = vmatprep.subr.mxu0 0.0
    %2262 = vmatpush1.msra.mxu0 0.0
    %2263 = vmatprep.subr.mxu0 0.0
    %2264 = vmatpush1.msra.mxu0 0.0
    %2265 = vmatprep.subr.mxu0 0.0
    %2266 = vmatpush1.msra.mxu0 0.0
    %2267 = vmatprep.subr.mxu0 0.0
    %2268 = vmatpush1.msra.mxu0 0.0
    %2269 = vmatprep.subr.mxu0 0.0
    %2270 = vmatpush1.msra.mxu0 0.0
    %2271 = vmatprep.mubr.f32.mxu0 0.0
    %2272 = vmatmul.mubr.f32.gmra.mrb[0].mxu0 %v2202
    %v2273 = vpop.f32.mrb[0].mxu0
    %v2274 = vadd.f32 0.0, %v2273
    %v2275 = vpop.f32.mrb[0].mxu0
    %2276 = vmatprep.mubr.f32.mxu0 0.0
    %2277 = vmatmul.mubr.f32.gmra.mrb[0].mxu0 %v2205
    %v2278 = vpop.f32.mrb[0].mxu0
    %v2279 = vadd.f32 0.0, %v2278
    %v2280 = vpop.f32.mrb[0].mxu0
    %2281 = vdwg.mxu0
    %v2282 = vadd.f32 %v1741, %v2274
    %v2283 = vadd.f32 %v1742, %v2279
    %v2284 = vadd.f32 %v63, %v2282
    %v2285 = vadd.f32 %v64, %v2283
    %v2286 = vld [vmem:[%s10] sm:$0x1]
    %v2288 = vlaneseq
    %v2289 = vshrl.u32 %v2288, 7
    %v2290 = vsub.s32 0, %v2289
    %v2291 = vrot.slane %v2286, %v2290
    %v2293 = vadd.f32 %v2284, %v2291
    %v2294 = vadd.f32 %v2285, %v2291
    %v2295 = vld [vmem:[%s17] sm:$0x1]
    %v2296 = vld [vmem:[%s18] sm:$0x1]
    %v2297 = vsel %vm71, %v2293, 0.0
    %2298 = vadd.xlane.f32.xlu0 %v2297
    %v2299 = vpop.xlane.xlu0 %2298
    %v2300 = vsel %vm71, %v2294, 0.0
    %2301 = vadd.xlane.f32.xlu0 %v2300
    %v2302 = vpop.xlane.xlu0 %2301
    %v2303 = vmul.f32 %v2299, %v78
    %v2304 = vmul.f32 %v2302, %v78
    %v2305 = vsub.f32 %v2293, %v2303
    %v2306 = vsub.f32 %v2294, %v2304
    %v2307 = vmul.f32 %v2305, %v2305
    %v2308 = vmul.f32 %v2306, %v2306
    %v2309 = vsel %vm71, %v2307, 0.0
    %2310 = vadd.xlane.f32.xlu0 %v2309
    %v2311 = vpop.xlane.xlu0 %2310
    %v2312 = vsel %vm71, %v2308, 0.0
    %2313 = vadd.xlane.f32.xlu0 %v2312
    %v2314 = vpop.xlane.xlu0 %2313
    %v2315 = vmul.f32 %v2311, %v78
    %v2316 = vmul.f32 %v2314, %v78
    %v2317 = vadd.f32 %v2315, 1e-05
    %v2318 = vadd.f32 %v2316, 1e-05
    %v2319 = vrsqrt.pop %v2317
    %v2320 = vrsqrt.pop %v2318
    %v2321 = vmul.f32 %v2305, %v2319
    %v2322 = vmul.f32 %v2306, %v2320
    %v2324 = vlaneseq
    %v2325 = vshrl.u32 %v2324, 7
    %v2326 = vsub.s32 0, %v2325
    %v2327 = vrot.slane %v2295, %v2326
    %v2329 = vmul.f32 %v2321, %v2327
    %v2330 = vmul.f32 %v2322, %v2327
    %v2332 = vlaneseq
    %v2333 = vshrl.u32 %v2332, 7
    %v2334 = vsub.s32 0, %v2333
    %v2335 = vrot.slane %v2296, %v2334
    %v2337 = vadd.f32 %v2329, %v2335
    %v2338 = vadd.f32 %v2330, %v2335
    %v2339 = vld [vmem:[%s11] sm:$0xff]
    %v2340 = vld [vmem:[%s11 + $0x8] sm:$0xff]
    %v2341 = vld [vmem:[%s11 + $0x10] sm:$0xff]
    %v2342 = vld [vmem:[%s11 + $0x18] sm:$0xff]
    %v2343 = vld [vmem:[%s12] sm:$0x1]
    %v2345 = vlaneseq
    %v2346 = vshrl.u32 %v2345, 7
    %v2347 = vsub.s32 0, %v2346
    %v2348 = vrot.slane %v2343, %v2347
    %v2351 = vsel %vm71, %v2337, 0
    %v2354 = vsel %vm71, %v2338, 0
    %2356 = vmatprep.subr.mxu0 0.0
    %2357 = vmatpush1.msra.mxu0 %v2339
    %2358 = vmatprep.subr.mxu0 0.0
    %2359 = vmatpush1.msra.mxu0 %v2340
    %2360 = vmatprep.subr.mxu0 0.0
    %2361 = vmatpush1.msra.mxu0 %v2341
    %2362 = vmatprep.subr.mxu0 0.0
    %2363 = vmatpush1.msra.mxu0 %v2342
    %2364 = vmatprep.subr.mxu0 0.0
    %2365 = vmatpush1.msra.mxu0 0.0
    %2366 = vmatprep.subr.mxu0 0.0
    %2367 = vmatpush1.msra.mxu0 0.0
    %2368 = vmatprep.subr.mxu0 0.0
    %2369 = vmatpush1.msra.mxu0 0.0
    %2370 = vmatprep.subr.mxu0 0.0
    %2371 = vmatpush1.msra.mxu0 0.0
    %2372 = vmatprep.subr.mxu0 0.0
    %2373 = vmatpush1.msra.mxu0 0.0
    %2374 = vmatprep.subr.mxu0 0.0
    %2375 = vmatpush1.msra.mxu0 0.0
    %2376 = vmatprep.subr.mxu0 0.0
    %2377 = vmatpush1.msra.mxu0 0.0
    %2378 = vmatprep.subr.mxu0 0.0
    %2379 = vmatpush1.msra.mxu0 0.0
    %2380 = vmatprep.subr.mxu0 0.0
    %2381 = vmatpush1.msra.mxu0 0.0
    %2382 = vmatprep.subr.mxu0 0.0
    %2383 = vmatpush1.msra.mxu0 0.0
    %2384 = vmatprep.subr.mxu0 0.0
    %2385 = vmatpush1.msra.mxu0 0.0
    %2386 = vmatprep.subr.mxu0 0.0
    %2387 = vmatpush1.msra.mxu0 0.0
    %2388 = vmatprep.subr.mxu0 0.0
    %2389 = vmatpush1.msra.mxu0 0.0
    %2390 = vmatprep.subr.mxu0 0.0
    %2391 = vmatpush1.msra.mxu0 0.0
    %2392 = vmatprep.subr.mxu0 0.0
    %2393 = vmatpush1.msra.mxu0 0.0
    %2394 = vmatprep.subr.mxu0 0.0
    %2395 = vmatpush1.msra.mxu0 0.0
    %2396 = vmatprep.subr.mxu0 0.0
    %2397 = vmatpush1.msra.mxu0 0.0
    %2398 = vmatprep.subr.mxu0 0.0
    %2399 = vmatpush1.msra.mxu0 0.0
    %2400 = vmatprep.subr.mxu0 0.0
    %2401 = vmatpush1.msra.mxu0 0.0
    %2402 = vmatprep.subr.mxu0 0.0
    %2403 = vmatpush1.msra.mxu0 0.0
    %2404 = vmatprep.subr.mxu0 0.0
    %2405 = vmatpush1.msra.mxu0 0.0
    %2406 = vmatprep.subr.mxu0 0.0
    %2407 = vmatpush1.msra.mxu0 0.0
    %2408 = vmatprep.subr.mxu0 0.0
    %2409 = vmatpush1.msra.mxu0 0.0
    %2410 = vmatprep.subr.mxu0 0.0
    %2411 = vmatpush1.msra.mxu0 0.0
    %2412 = vmatprep.subr.mxu0 0.0
    %2413 = vmatpush1.msra.mxu0 0.0
    %2414 = vmatprep.subr.mxu0 0.0
    %2415 = vmatpush1.msra.mxu0 0.0
    %2416 = vmatprep.subr.mxu0 0.0
    %2417 = vmatpush1.msra.mxu0 0.0
    %2418 = vmatprep.subr.mxu0 0.0
    %2419 = vmatpush1.msra.mxu0 0.0
    %2420 = vmatprep.mubr.f32.mxu0 0.0
    %2421 = vmatmul.mubr.f32.gmra.mrb[0].mxu0 %v2351
    %v2422 = vpop.f32.mrb[0].mxu0
    %v2423 = vadd.f32 %v2348, %v2422
    %v2424 = vpop.f32.mrb[0].mxu0
    %2425 = vmatprep.mubr.f32.mxu0 0.0
    %2426 = vmatmul.mubr.f32.gmra.mrb[0].mxu0 %v2354
    %v2427 = vpop.f32.mrb[0].mxu0
    %v2428 = vadd.f32 %v2348, %v2427
    %v2429 = vpop.f32.mrb[0].mxu0
    %2430 = vdwg.mxu0
    %v2431 = vmax.f32 %v2423, 0.0
    %v2432 = vmax.f32 %v2428, 0.0
    %v2433 = vld [vmem:[%s13] sm:$0xff]
    %v2434 = vld [vmem:[%s13 + $0x8] sm:$0xff]
    %v2435 = vld [vmem:[%s13 + $0x10] sm:$0xff]
    %v2436 = vld [vmem:[%s13 + $0x18] sm:$0xff]
    %v2437 = vld [vmem:[%s13 + $0x20] sm:$0xff]
    %v2438 = vld [vmem:[%s13 + $0x28] sm:$0xff]
    %v2439 = vld [vmem:[%s13 + $0x30] sm:$0xff]
    %v2440 = vld [vmem:[%s13 + $0x38] sm:$0xff]
    %v2441 = vld [vmem:[%s14] sm:$0x1]
    %v2443 = vlaneseq
    %v2444 = vshrl.u32 %v2443, 7
    %v2445 = vsub.s32 0, %v2444
    %v2446 = vrot.slane %v2441, %v2445
    %vm2448 = vcmask 523264
    %v2450 = vsel %vm2448, %v2431, 0
    %v2453 = vsel %vm2448, %v2432, 0
    %2455 = vmatprep.subr.mxu0 0.0
    %2456 = vmatpush1.msra.mxu0 %v2433
    %2457 = vmatprep.subr.mxu0 0.0
    %2458 = vmatpush1.msra.mxu0 %v2434
    %2459 = vmatprep.subr.mxu0 0.0
    %2460 = vmatpush1.msra.mxu0 %v2435
    %2461 = vmatprep.subr.mxu0 0.0
    %2462 = vmatpush1.msra.mxu0 %v2436
    %2463 = vmatprep.subr.mxu0 0.0
    %2464 = vmatpush1.msra.mxu0 %v2437
    %2465 = vmatprep.subr.mxu0 0.0
    %2466 = vmatpush1.msra.mxu0 %v2438
    %2467 = vmatprep.subr.mxu0 0.0
    %2468 = vmatpush1.msra.mxu0 %v2439
    %2469 = vmatprep.subr.mxu0 0.0
    %2470 = vmatpush1.msra.mxu0 %v2440
    %2471 = vmatprep.subr.mxu0 0.0
    %2472 = vmatpush1.msra.mxu0 0.0
    %2473 = vmatprep.subr.mxu0 0.0
    %2474 = vmatpush1.msra.mxu0 0.0
    %2475 = vmatprep.subr.mxu0 0.0
    %2476 = vmatpush1.msra.mxu0 0.0
    %2477 = vmatprep.subr.mxu0 0.0
    %2478 = vmatpush1.msra.mxu0 0.0
    %2479 = vmatprep.subr.mxu0 0.0
    %2480 = vmatpush1.msra.mxu0 0.0
    %2481 = vmatprep.subr.mxu0 0.0
    %2482 = vmatpush1.msra.mxu0 0.0
    %2483 = vmatprep.subr.mxu0 0.0
    %2484 = vmatpush1.msra.mxu0 0.0
    %2485 = vmatprep.subr.mxu0 0.0
    %2486 = vmatpush1.msra.mxu0 0.0
    %2487 = vmatprep.subr.mxu0 0.0
    %2488 = vmatpush1.msra.mxu0 0.0
    %2489 = vmatprep.subr.mxu0 0.0
    %2490 = vmatpush1.msra.mxu0 0.0
    %2491 = vmatprep.subr.mxu0 0.0
    %2492 = vmatpush1.msra.mxu0 0.0
    %2493 = vmatprep.subr.mxu0 0.0
    %2494 = vmatpush1.msra.mxu0 0.0
    %2495 = vmatprep.subr.mxu0 0.0
    %2496 = vmatpush1.msra.mxu0 0.0
    %2497 = vmatprep.subr.mxu0 0.0
    %2498 = vmatpush1.msra.mxu0 0.0
    %2499 = vmatprep.subr.mxu0 0.0
    %2500 = vmatpush1.msra.mxu0 0.0
    %2501 = vmatprep.subr.mxu0 0.0
    %2502 = vmatpush1.msra.mxu0 0.0
    %2503 = vmatprep.subr.mxu0 0.0
    %2504 = vmatpush1.msra.mxu0 0.0
    %2505 = vmatprep.subr.mxu0 0.0
    %2506 = vmatpush1.msra.mxu0 0.0
    %2507 = vmatprep.subr.mxu0 0.0
    %2508 = vmatpush1.msra.mxu0 0.0
    %2509 = vmatprep.subr.mxu0 0.0
    %2510 = vmatpush1.msra.mxu0 0.0
    %2511 = vmatprep.subr.mxu0 0.0
    %2512 = vmatpush1.msra.mxu0 0.0
    %2513 = vmatprep.subr.mxu0 0.0
    %2514 = vmatpush1.msra.mxu0 0.0
    %2515 = vmatprep.subr.mxu0 0.0
    %2516 = vmatpush1.msra.mxu0 0.0
    %2517 = vmatprep.subr.mxu0 0.0
    %2518 = vmatpush1.msra.mxu0 0.0
    %2519 = vmatprep.mubr.f32.mxu0 0.0
    %2520 = vmatmul.mubr.f32.gmra.mrb[0].mxu0 %v2450
    %v2521 = vpop.f32.mrb[0].mxu0
    %v2522 = vadd.f32 %v2446, %v2521
    %v2523 = vpop.f32.mrb[0].mxu0
    %2524 = vmatprep.mubr.f32.mxu0 0.0
    %2525 = vmatmul.mubr.f32.gmra.mrb[0].mxu0 %v2453
    %v2526 = vpop.f32.mrb[0].mxu0
    %v2527 = vadd.f32 %v2446, %v2526
    %v2528 = vpop.f32.mrb[0].mxu0
    %2529 = vdwg.mxu0
    %v2530 = vadd.f32 %v2293, %v2522
    %v2531 = vadd.f32 %v2294, %v2527
    %2532 = vst.msk [vmem:[#allocation2] sm:$0xff] %vm71, %v2530
    %2533 = vst.msk [vmem:[#allocation2 + $0x8] sm:$0xff] %vm71, %v2531
    // Predicated region
    $region78: #{transformer_encoder_layer.1} parent=1 // pred_check
      _
    $region79: #{transformer_encoder_layer.1} parent=1 // pred_check_branch
      %2535 = sbr.rel (0) target = $region81
    $region80: #{transformer_encoder_layer.1} parent=1 // pred_region
      %s2537 = ssub.s32 256, 256
      %2538 = vsyncadd [#allocation3], %s2537
      %s2539 = sshll.u32 [#allocation2], 4
      %s2540 = int_to_ptr.vmem [resolvable:$true] %s2539
      %2545 = dma.vmem_to_hbm [thread:$0]  %s2540, 256, %s19, [#allocation3], 128, 128, 8
    $region81: #{transformer_encoder_layer.1} parent=1 // pred_fallthru
      _
    // Predicated region
    $region82: #{transformer_encoder_layer.1} parent=1 // pred_check
      _
    $region83: #{transformer_encoder_layer.1} parent=1 // pred_check_branch
      %2547 = sbr.rel (0) target = $region85
    $region84: #{transformer_encoder_layer.1} parent=1 // pred_region
      %2548 = dma.done [#allocation3], 256
    $region85: #{transformer_encoder_layer.1} parent=1 // pred_fallthru
      _
    %2549 = vsyncpa [#allocation3], 1

</llo_original>
